<compile_context>
chip_gen: v7x
topology: tpu7x:2x2x1
jax: 0.10.0
libtpu: 0.0.40
codegen_flags: <defaults>
</compile_context>

<pallas_src>
import numpy as np
import jax
import jax.numpy as jnp
from jax.experimental import pallas as pl
from jax.experimental.pallas import tpu as pltpu

WIDTH = 32      # "width"
LENGTH = 4      # "length" (must be 3 or 4 so the torch module's shapes line up)
K_CHUNKS = 3    # pc is split along dim 1 into K chunks of `length` columns

BLK = 128       # lane width of every fused weight block (output lanes)
LP = 4          # per-encoder lane slot for the tiny dims (length, length//2, ...)
CONV_OFF = 16   # per-encoder lane slot for the flattened conv window (3*length <= 16)

# Fused layer blocks and their padded input-row counts (multiples of 16 so the
# bf16 slab slices stay aligned to the native (16,128) tile).
BLOCK_ROWS = (
    32,   # 0  conv        window: enc1 @ lanes 0..3*L-1, enc2 @ 16..          (no bias)
    16,   # 1  enc1        tiny dims: enc1 @ 0, enc2 @ LP
    16,   # 2  enc2
    16,   # 3  enc3
    16,   # 4  dec1
    16,   # 5  dec2
    16,   # 6  transformer1   (L -> 2W)       out: enc1 @ 0..63,  enc2 @ 64..127
    128,  # 7  transformer2   (2W -> W)       out: enc1 @ 0..31,  enc2 @ 32..63
    64,   # 8  transformer3   (W -> W/2)      out: enc1 @ 0..15,  enc2 @ 16..31
    32,   # 9  transformer5 y-part (W/2 -> W) out: width layout              (no bias)
    64,   # 10 composed transformer4 . transformer5-tmp1-part (W -> W)
    64,   # 11 final1         (2W -> 2W)
    64,   # 12 final2
    64,   # 13 final3
    64,   # 14 final4
    64,   # 15 rot1 / trans1  (rot @ 0..31, trans @ 32..63)
    64,   # 16 rot2 / trans2  (out: rot @ 0..4, trans @ 8..12)
    16,   # 17 rot3 / trans3  (out: rot @ 0..2, trans @ 3..5)                 (no tanh)
)
BLOCK_OFF = tuple(int(x) for x in np.cumsum((0,) + BLOCK_ROWS[:-1]))
W_ROWS = int(sum(BLOCK_ROWS))                       # 816

BIASED_BLOCKS = (1, 2, 3, 4, 5, 6, 7, 8, 10, 11, 12, 13, 14, 15, 16, 17)
BIAS_ROW = {b: j for j, b in enumerate(BIASED_BLOCKS)}
N_BIAS = len(BIASED_BLOCKS)                         # 16
BIAS_OFF = W_ROWS                                   # 816 (multiple of 16)
SLAB_ROWS = W_ROWS + N_BIAS                         # 832


# ----------------------------- parameter initialization ---------------------------

def init_encoder_params(key, width, length):
    ks = iter(jax.random.split(key, 32))

    def lin(in_f, out_f):
        bound = 1.0 / np.sqrt(in_f)
        w = jax.random.uniform(next(ks), (in_f, out_f), jnp.float32, -bound, bound)
        b = jax.random.uniform(next(ks), (out_f,), jnp.float32, -bound, bound)
        return w, b

    p = {}
    bound = 1.0 / np.sqrt(length * 3)
    # torch Conv1d weight layout: (out_ch, in_ch, kernel); bias=False in the spec
    p['conv_w'] = jax.random.uniform(next(ks), (length, length, 3), jnp.float32, -bound, bound)
    p['enc1_w'], p['enc1_b'] = lin(length, length // 2)
    p['enc2_w'], p['enc2_b'] = lin(length // 2, length // 3)
    p['enc3_w'], p['enc3_b'] = lin(length // 3, length // 3)
    p['dec1_w'], p['dec1_b'] = lin(length // 3, length // 2)
    p['dec2_w'], p['dec2_b'] = lin(length // 2, length)
    p['t1_w'], p['t1_b'] = lin(length, width * 2)
    p['t2_w'], p['t2_b'] = lin(width * 2, width)
    p['t3_w'], p['t3_b'] = lin(width, width // 2)
    p['t4_w'], p['t4_b'] = lin(width, width // 2)
    p['t5_w'], p['t5_b'] = lin(width, width)
    return p


def init_final_params(key, width):
    ks = iter(jax.random.split(key, 32))

    def lin(in_f, out_f):
        bound = 1.0 / np.sqrt(in_f)
        w = jax.random.uniform(next(ks), (in_f, out_f), jnp.float32, -bound, bound)
        b = jax.random.uniform(next(ks), (out_f,), jnp.float32, -bound, bound)
        return w, b

    p = {}
    for name in ('f1', 'f2', 'f3', 'f4'):
        p[f'{name}_w'], p[f'{name}_b'] = lin(width * 2, width * 2)
    for name in ('rot', 'trans'):
        p[f'{name}1_w'], p[f'{name}1_b'] = lin(width, width)
        p[f'{name}2_w'], p[f'{name}2_b'] = lin(width, 5)
        p[f'{name}3_w'], p[f'{name}3_b'] = lin(5, 3)
    return p


# --------------------------- host-side slab packing (glue) ------------------------

def pack_params(e1, e2, f, width=WIDTH, length=LENGTH):
    """Pack all weights + biases into ONE (832, 128) bf16 slab.

    Lane layout conventions (enc1 / rot in the low lanes, enc2 / trans high):
      conv window : enc1 @ 0 , enc2 @ CONV_OFF(=16)
      tiny dims   : enc1 @ 0 , enc2 @ LP(=4)
      2*width     : enc1 @ 0 , enc2 @ 64
      width       : enc1 @ 0 , enc2 @ 32      (also rot @ 0, trans @ 32)
      width//2    : enc1 @ 0 , enc2 @ 16
      5-dims      : rot  @ 0 , trans @ 8
      3-dims      : rot  @ 0 , trans @ 3      (final output: lanes 0..5)
    Zero padding is exact (zero rows/cols/bias lanes, tanh(0)=0), which is what
    makes both the block-diagonal fusion and the t4.t5 composition exact.
    """
    hw, w2 = width // 2, width * 2
    slab = np.zeros((SLAB_ROWS, BLK), np.float32)

    def put_w(blk, w, row, col):
        w = np.asarray(w, np.float32)
        assert row + w.shape[0] <= BLOCK_ROWS[blk]
        r0 = BLOCK_OFF[blk]
        slab[r0 + row: r0 + row + w.shape[0], col: col + w.shape[1]] = w

    def put_b(blk, b, col):
        b = np.asarray(b, np.float32)
        slab[BIAS_OFF + BIAS_ROW[blk], col: col + b.shape[0]] = b

    def conv_io(p):
        # (out,in,k) -> (in*k, out): the conv becomes a matvec on the flat window
        return np.transpose(np.asarray(p['conv_w'], np.float32), (1, 2, 0)).reshape(length * 3, length)

    # block 0: Conv1d (bias=False in the torch spec), block-diagonal over encoders
    put_w(0, conv_io(e1), 0, 0)
    put_w(0, conv_io(e2), CONV_OFF, LP)

    # blocks 1..5: enc1..dec2 (tiny dims, per-encoder slot of LP lanes)
    for blk, name in enumerate(('enc1', 'enc2', 'enc3', 'dec1', 'dec2'), start=1):
        put_w(blk, e1[f'{name}_w'], 0, 0);   put_b(blk, e1[f'{name}_b'], 0)
        put_w(blk, e2[f'{name}_w'], LP, LP); put_b(blk, e2[f'{name}_b'], LP)

    # block 6: transformer1 (length -> 2*width)
    put_w(6, e1['t1_w'], 0, 0);      put_b(6, e1['t1_b'], 0)
    put_w(6, e2['t1_w'], LP, w2);    put_b(6, e2['t1_b'], w2)
    # block 7: transformer2 (2*width -> width)
    put_w(7, e1['t2_w'], 0, 0);      put_b(7, e1['t2_b'], 0)
    put_w(7, e2['t2_w'], w2, width); put_b(7, e2['t2_b'], width)
    # block 8: transformer3 (width -> width//2)
    put_w(8, e1['t3_w'], 0, 0);        put_b(8, e1['t3_b'], 0)
    put_w(8, e2['t3_w'], width, hw);   put_b(8, e2['t3_b'], hw)

    # block 9: transformer5 y-part (width//2 -> width), hoisted out of the
    # recurrence: it only depends on the per-chunk y, so it runs once at M=8.
    put_w(9, np.asarray(e1['t5_w'], np.float32)[:hw], 0, 0)
    put_w(9, np.asarray(e2['t5_w'], np.float32)[:hw], hw, width)

    # block 10: transformer4 composed with transformer5's tmp1-part.  Exact:
    #   tmp_new = tanh(y @ W5[:hw] + (tmp @ W4 + b4) @ W5[hw:] + b5)
    #           = tanh(y_contrib + tmp @ (W4 @ W5[hw:]) + (b4 @ W5[hw:] + b5))
    for enc, off in ((e1, 0), (e2, width)):
        w4 = np.asarray(enc['t4_w'], np.float32)          # (width, hw)
        b4 = np.asarray(enc['t4_b'], np.float32)          # (hw,)
        w5t = np.asarray(enc['t5_w'], np.float32)[hw:]    # (hw, width)
        b5 = np.asarray(enc['t5_b'], np.float32)          # (width,)
        put_w(10, w4 @ w5t, off, off)
        put_b(10, b4 @ w5t + b5, off)

    # blocks 11..14: final1..final4 (input is already cat(src_tmp, dst_tmp))
    for i, name in enumerate(('f1', 'f2', 'f3', 'f4')):
        put_w(11 + i, f[f'{name}_w'], 0, 0)
        put_b(11 + i, f[f'{name}_b'], 0)

    # blocks 15..17: rot / trans heads, block-diagonal (rot low, trans high);
    # rot3/trans3 outputs land in lanes 0..2 / 3..5 so out[0, 0:6] is the answer.
    put_w(15, f['rot1_w'], 0, 0);           put_b(15, f['rot1_b'], 0)
    put_w(15, f['trans1_w'], width, width); put_b(15, f['trans1_b'], width)
    put_w(16, f['rot2_w'], 0, 0);           put_b(16, f['rot2_b'], 0)
    put_w(16, f['trans2_w'], width, 8);     put_b(16, f['trans2_b'], 8)
    put_w(17, f['rot3_w'], 0, 0);           put_b(17, f['rot3_b'], 0)
    put_w(17, f['trans3_w'], 8, 3);         put_b(17, f['trans3_b'], 3)

    return jnp.asarray(slab, jnp.bfloat16)


def build_windows(src_pc, dst_pc, length=LENGTH):
    """im2col both point clouds into one (8, 128) f32 slab.

    Row k holds chunk k of BOTH encoders: src window in lanes [0, 3*length),
    dst window in lanes [CONV_OFF, CONV_OFF + 3*length).  Rows K.. stay zero.
    Conv1d(length, length, 3, stride=2) has exactly one output position for
    length in {3,4}, so the window is columns 0:3 of each chunk, flattened
    row-major over (in_channel, kernel).
    """
    k = src_pc.shape[1] // length
    assert k <= 8, "chunk-batched layout needs K <= 8 sublane rows"
    s = jnp.stack([src_pc[:, i * length:i * length + 3].reshape(-1) for i in range(k)])
    d = jnp.stack([dst_pc[:, i * length:i * length + 3].reshape(-1) for i in range(k)])
    wins = jnp.zeros((8, BLK), jnp.float32)
    wins = wins.at[:k, 0:3 * length].set(s)
    wins = wins.at[:k, CONV_OFF:CONV_OFF + 3 * length].set(d)
    return wins


# ----------------------------------- kernel ---------------------------------------

def point_clouds_kernel(wins_ref, w_ref, out_ref):
    def wblk(i):                       # static, tile-aligned view of weight block i
        off = BLOCK_OFF[i]
        return w_ref[off:off + BLOCK_ROWS[i], :]

    # load the 16 bias rows once (aligned (16,128) bf16 block), convert to f32
    biases = w_ref[BIAS_OFF:BIAS_OFF + N_BIAS, :].astype(jnp.float32)

    def bias(i):                       # (1, 128) f32 bias row of block i
        j = BIAS_ROW[i]
        return biases[j:j + 1, :]

    def matmul(x, i):                  # bf16 x bf16 -> f32 on the MXU
        kdim = BLOCK_ROWS[i]
        return jnp.dot(x[:, :kdim].astype(jnp.bfloat16), wblk(i),
                       preferred_element_type=jnp.float32)

    # (1) chunk-batched, encoder-block-diagonal prologue (blocks 0..8):
    #     conv -> enc1..enc3 -> dec1..dec2 -> transformer1..3, rows 0..K-1 = chunks.
    x = wins_ref[...]                                   # (8, 128) f32
    x = jnp.tanh(matmul(x, 0))                          # conv (bias=False)
    for i in range(1, 9):
        x = jnp.tanh(matmul(x, i) + bias(i))

    # (2) transformer5 y-contribution, hoisted out of the recurrence (M=8, once).
    y_contrib = matmul(x, 9)                            # (8, 128) f32, row k = chunk k

    # (3) chunk recurrence: ONE matmul per chunk (composed transformer4 . t5-tmp1).
    b_comp = bias(10)
    tmp = jnp.zeros((1, BLK), jnp.float32)              # [src_tmp(32) | dst_tmp(32) | 0..]
    for k in range(K_CHUNKS):
        tmp = jnp.tanh(matmul(tmp, 10) + y_contrib[k:k + 1, :] + b_comp)

    # (4) FinalСNN head: final1..4, rot/trans chains fused block-diagonally.
    for i in range(11, 17):                             # final1..4, rot1/trans1, rot2/trans2
        tmp = jnp.tanh(matmul(tmp, i) + bias(i))
    out_ref[...] = matmul(tmp, 17) + bias(17)           # rot3 @ lanes 0..2, trans3 @ 3..5


def point_clouds_cnn_forward(src_pc, dst_pc, wslab):
    wins = build_windows(src_pc, dst_pc)
    out = pl.pallas_call(
        point_clouds_kernel,
        out_shape=jax.ShapeDtypeStruct((1, BLK), jnp.float32),
        in_specs=[pl.BlockSpec(memory_space=pltpu.MemorySpace.VMEM)] * 2,
        out_specs=pl.BlockSpec(memory_space=pltpu.MemorySpace.VMEM),
    )(wins, wslab)
    return out[0, 0:6]                 # torch.cat((rot, trans)) -> shape (6,)


# ------------------------------ pure-JAX reference --------------------------------

def reference_forward(src_pc, dst_pc, enc1_p, enc2_p, fin_p):
    width, length = WIDTH, LENGTH

    def encoder(pc, p):
        tmp = jnp.zeros((width,), jnp.float32)
        for i in range(pc.shape[1] // length):
            chunk = pc[:, i * length:(i + 1) * length]
            tmp1 = tmp @ p['t4_w'] + p['t4_b']
            x = jnp.tanh(jnp.einsum('oik,ik->o', p['conv_w'], chunk[:, 0:3]))
            x = jnp.tanh(x @ p['enc1_w'] + p['enc1_b'])
            x = jnp.tanh(x @ p['enc2_w'] + p['enc2_b'])
            x = jnp.tanh(x @ p['enc3_w'] + p['enc3_b'])
            x = jnp.tanh(x @ p['dec1_w'] + p['dec1_b'])
            x = jnp.tanh(x @ p['dec2_w'] + p['dec2_b'])
            y = jnp.tanh(x @ p['t1_w'] + p['t1_b'])
            y = jnp.tanh(y @ p['t2_w'] + p['t2_b'])
            y = jnp.tanh(y @ p['t3_w'] + p['t3_b'])
            tmp = jnp.tanh(jnp.concatenate([y, tmp1]) @ p['t5_w'] + p['t5_b'])
        return tmp

    s, d = encoder(src_pc, enc1_p), encoder(dst_pc, enc2_p)
    t = jnp.tanh(jnp.concatenate([s, d]) @ fin_p['f1_w'] + fin_p['f1_b'])
    t = jnp.tanh(t @ fin_p['f2_w'] + fin_p['f2_b'])
    t = jnp.tanh(t @ fin_p['f3_w'] + fin_p['f3_b'])
    t = jnp.tanh(t @ fin_p['f4_w'] + fin_p['f4_b'])
    rot, trn = t[:width], t[width:]
    rot = jnp.tanh(rot @ fin_p['rot1_w'] + fin_p['rot1_b'])
    rot = jnp.tanh(rot @ fin_p['rot2_w'] + fin_p['rot2_b'])
    rot = rot @ fin_p['rot3_w'] + fin_p['rot3_b']
    trn = jnp.tanh(trn @ fin_p['trans1_w'] + fin_p['trans1_b'])
    trn = jnp.tanh(trn @ fin_p['trans2_w'] + fin_p['trans2_b'])
    trn = trn @ fin_p['trans3_w'] + fin_p['trans3_b']
    return jnp.concatenate([rot, trn])


# ------------------------------------ main -----------------------------------------

if __name__ == "__main__":
    key = jax.random.PRNGKey(0)
    k_in1, k_in2, k_e1, k_e2, k_f = jax.random.split(key, 5)

    src_pc = jax.random.normal(k_in1, (LENGTH, K_CHUNKS * LENGTH), jnp.float32)
    dst_pc = jax.random.normal(k_in2, (LENGTH, K_CHUNKS * LENGTH), jnp.float32)
    enc1_p = init_encoder_params(k_e1, WIDTH, LENGTH)
    enc2_p = init_encoder_params(k_e2, WIDTH, LENGTH)
    fin_p = init_final_params(k_f, WIDTH)

    # one-time host-side packing into the single bf16 VMEM slab
    wslab = pack_params(enc1_p, enc2_p, fin_p)

    fwd = jax.jit(point_clouds_cnn_forward)
    out = jax.block_until_ready(fwd(src_pc, dst_pc, wslab))

    assert out.shape == (6,), out.shape
    ref = reference_forward(src_pc, dst_pc, enc1_p, enc2_p, fin_p)
    # tolerance reflects bf16 weight/bias storage + bf16 MXU operands vs f32 reference
    np.testing.assert_allclose(np.asarray(out), np.asarray(ref), rtol=4e-2, atol=4e-2)

    print("KERNEL_OK")
</pallas_src>

<mosaic_0001>
module attributes {stable_mosaic.version = 11 : i64} {
  func.func @point_clouds_kernel(%arg0: memref<8x128xf32, #tpu.memory_space<vmem>>, %arg1: memref<832x128xbf16, #tpu.memory_space<vmem>>, %arg2: memref<1x128xf32, #tpu.memory_space<vmem>>) attributes {dimension_semantics = [], scalar_prefetch = 0 : i64, scratch_operands = 0 : i64, tpu.core_type = #tpu.core_type<tc>} {
    %c816 = arith.constant 816 : index
    %c0 = arith.constant 0 : index
    %0 = vector.load %arg1[%c816, %c0] : memref<832x128xbf16, #tpu.memory_space<vmem>>, vector<16x128xbf16>
    %1 = arith.extf %0 : vector<16x128xbf16> to vector<16x128xf32>
    %c0_0 = arith.constant 0 : index
    %c0_1 = arith.constant 0 : index
    %2 = vector.load %arg0[%c0_0, %c0_1] : memref<8x128xf32, #tpu.memory_space<vmem>>, vector<8x128xf32>
    %3 = vector.extract_strided_slice %2 {offsets = [0, 0], sizes = [8, 32], strides = [1, 1]} : vector<8x128xf32> to vector<8x32xf32>
    %4 = arith.truncf %3 : vector<8x32xf32> to vector<8x32xbf16>
    %c0_2 = arith.constant 0 : index
    %c0_3 = arith.constant 0 : index
    %5 = vector.load %arg1[%c0_2, %c0_3] : memref<832x128xbf16, #tpu.memory_space<vmem>>, vector<32x128xbf16>
    %cst = arith.constant dense<0.000000e+00> : vector<8x128xf32>
    %6 = tpu.matmul %4, %5, %cst {dimension_numbers = #tpu.dot_dimension_numbers<[1], [0], [0], [1], [0, 0, 1, 1], [], []>} : vector<8x32xbf16>, vector<32x128xbf16>, vector<8x128xf32> -> vector<8x128xf32>
    %7 = math.tanh %6 : vector<8x128xf32>
    %8 = vector.extract_strided_slice %7 {offsets = [0, 0], sizes = [8, 16], strides = [1, 1]} : vector<8x128xf32> to vector<8x16xf32>
    %9 = arith.truncf %8 : vector<8x16xf32> to vector<8x16xbf16>
    %c32 = arith.constant 32 : index
    %c0_4 = arith.constant 0 : index
    %10 = vector.load %arg1[%c32, %c0_4] : memref<832x128xbf16, #tpu.memory_space<vmem>>, vector<16x128xbf16>
    %cst_5 = arith.constant dense<0.000000e+00> : vector<8x128xf32>
    %11 = tpu.matmul %9, %10, %cst_5 {dimension_numbers = #tpu.dot_dimension_numbers<[1], [0], [0], [1], [0, 0, 1, 1], [], []>} : vector<8x16xbf16>, vector<16x128xbf16>, vector<8x128xf32> -> vector<8x128xf32>
    %12 = vector.extract_strided_slice %1 {offsets = [0, 0], sizes = [1, 128], strides = [1, 1]} : vector<16x128xf32> to vector<1x128xf32>
    %13 = vector.broadcast %12 : vector<1x128xf32> to vector<8x128xf32>
    %14 = arith.addf %11, %13 : vector<8x128xf32>
    %15 = math.tanh %14 : vector<8x128xf32>
    %16 = vector.extract_strided_slice %15 {offsets = [0, 0], sizes = [8, 16], strides = [1, 1]} : vector<8x128xf32> to vector<8x16xf32>
    %17 = arith.truncf %16 : vector<8x16xf32> to vector<8x16xbf16>
    %c48 = arith.constant 48 : index
    %c0_6 = arith.constant 0 : index
    %18 = vector.load %arg1[%c48, %c0_6] : memref<832x128xbf16, #tpu.memory_space<vmem>>, vector<16x128xbf16>
    %cst_7 = arith.constant dense<0.000000e+00> : vector<8x128xf32>
    %19 = tpu.matmul %17, %18, %cst_7 {dimension_numbers = #tpu.dot_dimension_numbers<[1], [0], [0], [1], [0, 0, 1, 1], [], []>} : vector<8x16xbf16>, vector<16x128xbf16>, vector<8x128xf32> -> vector<8x128xf32>
    %20 = vector.extract_strided_slice %1 {offsets = [1, 0], sizes = [1, 128], strides = [1, 1]} : vector<16x128xf32> to vector<1x128xf32>
    %21 = vector.broadcast %20 : vector<1x128xf32> to vector<8x128xf32>
    %22 = arith.addf %19, %21 : vector<8x128xf32>
    %23 = math.tanh %22 : vector<8x128xf32>
    %24 = vector.extract_strided_slice %23 {offsets = [0, 0], sizes = [8, 16], strides = [1, 1]} : vector<8x128xf32> to vector<8x16xf32>
    %25 = arith.truncf %24 : vector<8x16xf32> to vector<8x16xbf16>
    %c64 = arith.constant 64 : index
    %c0_8 = arith.constant 0 : index
    %26 = vector.load %arg1[%c64, %c0_8] : memref<832x128xbf16, #tpu.memory_space<vmem>>, vector<16x128xbf16>
    %cst_9 = arith.constant dense<0.000000e+00> : vector<8x128xf32>
    %27 = tpu.matmul %25, %26, %cst_9 {dimension_numbers = #tpu.dot_dimension_numbers<[1], [0], [0], [1], [0, 0, 1, 1], [], []>} : vector<8x16xbf16>, vector<16x128xbf16>, vector<8x128xf32> -> vector<8x128xf32>
    %28 = vector.extract_strided_slice %1 {offsets = [2, 0], sizes = [1, 128], strides = [1, 1]} : vector<16x128xf32> to vector<1x128xf32>
    %29 = vector.broadcast %28 : vector<1x128xf32> to vector<8x128xf32>
    %30 = arith.addf %27, %29 : vector<8x128xf32>
    %31 = math.tanh %30 : vector<8x128xf32>
    %32 = vector.extract_strided_slice %31 {offsets = [0, 0], sizes = [8, 16], strides = [1, 1]} : vector<8x128xf32> to vector<8x16xf32>
    %33 = arith.truncf %32 : vector<8x16xf32> to vector<8x16xbf16>
    %c80 = arith.constant 80 : index
    %c0_10 = arith.constant 0 : index
    %34 = vector.load %arg1[%c80, %c0_10] : memref<832x128xbf16, #tpu.memory_space<vmem>>, vector<16x128xbf16>
    %cst_11 = arith.constant dense<0.000000e+00> : vector<8x128xf32>
    %35 = tpu.matmul %33, %34, %cst_11 {dimension_numbers = #tpu.dot_dimension_numbers<[1], [0], [0], [1], [0, 0, 1, 1], [], []>} : vector<8x16xbf16>, vector<16x128xbf16>, vector<8x128xf32> -> vector<8x128xf32>
    %36 = vector.extract_strided_slice %1 {offsets = [3, 0], sizes = [1, 128], strides = [1, 1]} : vector<16x128xf32> to vector<1x128xf32>
    %37 = vector.broadcast %36 : vector<1x128xf32> to vector<8x128xf32>
    %38 = arith.addf %35, %37 : vector<8x128xf32>
    %39 = math.tanh %38 : vector<8x128xf32>
    %40 = vector.extract_strided_slice %39 {offsets = [0, 0], sizes = [8, 16], strides = [1, 1]} : vector<8x128xf32> to vector<8x16xf32>
    %41 = arith.truncf %40 : vector<8x16xf32> to vector<8x16xbf16>
    %c96 = arith.constant 96 : index
    %c0_12 = arith.constant 0 : index
    %42 = vector.load %arg1[%c96, %c0_12] : memref<832x128xbf16, #tpu.memory_space<vmem>>, vector<16x128xbf16>
    %cst_13 = arith.constant dense<0.000000e+00> : vector<8x128xf32>
    %43 = tpu.matmul %41, %42, %cst_13 {dimension_numbers = #tpu.dot_dimension_numbers<[1], [0], [0], [1], [0, 0, 1, 1], [], []>} : vector<8x16xbf16>, vector<16x128xbf16>, vector<8x128xf32> -> vector<8x128xf32>
    %44 = vector.extract_strided_slice %1 {offsets = [4, 0], sizes = [1, 128], strides = [1, 1]} : vector<16x128xf32> to vector<1x128xf32>
    %45 = vector.broadcast %44 : vector<1x128xf32> to vector<8x128xf32>
    %46 = arith.addf %43, %45 : vector<8x128xf32>
    %47 = math.tanh %46 : vector<8x128xf32>
    %48 = vector.extract_strided_slice %47 {offsets = [0, 0], sizes = [8, 16], strides = [1, 1]} : vector<8x128xf32> to vector<8x16xf32>
    %49 = arith.truncf %48 : vector<8x16xf32> to vector<8x16xbf16>
    %c112 = arith.constant 112 : index
    %c0_14 = arith.constant 0 : index
    %50 = vector.load %arg1[%c112, %c0_14] : memref<832x128xbf16, #tpu.memory_space<vmem>>, vector<16x128xbf16>
    %cst_15 = arith.constant dense<0.000000e+00> : vector<8x128xf32>
    %51 = tpu.matmul %49, %50, %cst_15 {dimension_numbers = #tpu.dot_dimension_numbers<[1], [0], [0], [1], [0, 0, 1, 1], [], []>} : vector<8x16xbf16>, vector<16x128xbf16>, vector<8x128xf32> -> vector<8x128xf32>
    %52 = vector.extract_strided_slice %1 {offsets = [5, 0], sizes = [1, 128], strides = [1, 1]} : vector<16x128xf32> to vector<1x128xf32>
    %53 = vector.broadcast %52 : vector<1x128xf32> to vector<8x128xf32>
    %54 = arith.addf %51, %53 : vector<8x128xf32>
    %55 = math.tanh %54 : vector<8x128xf32>
    %56 = arith.truncf %55 : vector<8x128xf32> to vector<8x128xbf16>
    %c128 = arith.constant 128 : index
    %c0_16 = arith.constant 0 : index
    %57 = vector.load %arg1[%c128, %c0_16] : memref<832x128xbf16, #tpu.memory_space<vmem>>, vector<128x128xbf16>
    %cst_17 = arith.constant dense<0.000000e+00> : vector<8x128xf32>
    %58 = tpu.matmul %56, %57, %cst_17 {dimension_numbers = #tpu.dot_dimension_numbers<[1], [0], [0], [1], [0, 0, 1, 1], [], []>} : vector<8x128xbf16>, vector<128x128xbf16>, vector<8x128xf32> -> vector<8x128xf32>
    %59 = vector.extract_strided_slice %1 {offsets = [6, 0], sizes = [1, 128], strides = [1, 1]} : vector<16x128xf32> to vector<1x128xf32>
    %60 = vector.broadcast %59 : vector<1x128xf32> to vector<8x128xf32>
    %61 = arith.addf %58, %60 : vector<8x128xf32>
    %62 = math.tanh %61 : vector<8x128xf32>
    %63 = vector.extract_strided_slice %62 {offsets = [0, 0], sizes = [8, 64], strides = [1, 1]} : vector<8x128xf32> to vector<8x64xf32>
    %64 = arith.truncf %63 : vector<8x64xf32> to vector<8x64xbf16>
    %c256 = arith.constant 256 : index
    %c0_18 = arith.constant 0 : index
    %65 = vector.load %arg1[%c256, %c0_18] : memref<832x128xbf16, #tpu.memory_space<vmem>>, vector<64x128xbf16>
    %cst_19 = arith.constant dense<0.000000e+00> : vector<8x128xf32>
    %66 = tpu.matmul %64, %65, %cst_19 {dimension_numbers = #tpu.dot_dimension_numbers<[1], [0], [0], [1], [0, 0, 1, 1], [], []>} : vector<8x64xbf16>, vector<64x128xbf16>, vector<8x128xf32> -> vector<8x128xf32>
    %67 = vector.extract_strided_slice %1 {offsets = [7, 0], sizes = [1, 128], strides = [1, 1]} : vector<16x128xf32> to vector<1x128xf32>
    %68 = vector.broadcast %67 : vector<1x128xf32> to vector<8x128xf32>
    %69 = arith.addf %66, %68 : vector<8x128xf32>
    %70 = math.tanh %69 : vector<8x128xf32>
    %71 = vector.extract_strided_slice %70 {offsets = [0, 0], sizes = [8, 32], strides = [1, 1]} : vector<8x128xf32> to vector<8x32xf32>
    %72 = arith.truncf %71 : vector<8x32xf32> to vector<8x32xbf16>
    %c320 = arith.constant 320 : index
    %c0_20 = arith.constant 0 : index
    %73 = vector.load %arg1[%c320, %c0_20] : memref<832x128xbf16, #tpu.memory_space<vmem>>, vector<32x128xbf16>
    %cst_21 = arith.constant dense<0.000000e+00> : vector<8x128xf32>
    %74 = tpu.matmul %72, %73, %cst_21 {dimension_numbers = #tpu.dot_dimension_numbers<[1], [0], [0], [1], [0, 0, 1, 1], [], []>} : vector<8x32xbf16>, vector<32x128xbf16>, vector<8x128xf32> -> vector<8x128xf32>
    %75 = vector.extract_strided_slice %1 {offsets = [8, 0], sizes = [1, 128], strides = [1, 1]} : vector<16x128xf32> to vector<1x128xf32>
    %cst_22 = arith.constant 0.000000e+00 : f32
    %76 = vector.broadcast %cst_22 : f32 to vector<1x128xf32>
    %77 = vector.extract_strided_slice %76 {offsets = [0, 0], sizes = [1, 64], strides = [1, 1]} : vector<1x128xf32> to vector<1x64xf32>
    %78 = arith.truncf %77 : vector<1x64xf32> to vector<1x64xbf16>
    %c352 = arith.constant 352 : index
    %c0_23 = arith.constant 0 : index
    %79 = vector.load %arg1[%c352, %c0_23] : memref<832x128xbf16, #tpu.memory_space<vmem>>, vector<64x128xbf16>
    %cst_24 = arith.constant dense<0.000000e+00> : vector<1x128xf32>
    %80 = tpu.matmul %78, %79, %cst_24 {dimension_numbers = #tpu.dot_dimension_numbers<[1], [0], [0], [1], [0, 0, 1, 1], [], []>} : vector<1x64xbf16>, vector<64x128xbf16>, vector<1x128xf32> -> vector<1x128xf32>
    %81 = vector.extract_strided_slice %74 {offsets = [0, 0], sizes = [1, 128], strides = [1, 1]} : vector<8x128xf32> to vector<1x128xf32>
    %82 = arith.addf %80, %81 : vector<1x128xf32>
    %83 = arith.addf %82, %75 : vector<1x128xf32>
    %84 = math.tanh %83 : vector<1x128xf32>
    %85 = vector.extract_strided_slice %84 {offsets = [0, 0], sizes = [1, 64], strides = [1, 1]} : vector<1x128xf32> to vector<1x64xf32>
    %86 = arith.truncf %85 : vector<1x64xf32> to vector<1x64xbf16>
    %c352_25 = arith.constant 352 : index
    %c0_26 = arith.constant 0 : index
    %87 = vector.load %arg1[%c352_25, %c0_26] : memref<832x128xbf16, #tpu.memory_space<vmem>>, vector<64x128xbf16>
    %cst_27 = arith.constant dense<0.000000e+00> : vector<1x128xf32>
    %88 = tpu.matmul %86, %87, %cst_27 {dimension_numbers = #tpu.dot_dimension_numbers<[1], [0], [0], [1], [0, 0, 1, 1], [], []>} : vector<1x64xbf16>, vector<64x128xbf16>, vector<1x128xf32> -> vector<1x128xf32>
    %89 = vector.extract_strided_slice %74 {offsets = [1, 0], sizes = [1, 128], strides = [1, 1]} : vector<8x128xf32> to vector<1x128xf32>
    %90 = arith.addf %88, %89 : vector<1x128xf32>
    %91 = arith.addf %90, %75 : vector<1x128xf32>
    %92 = math.tanh %91 : vector<1x128xf32>
    %93 = vector.extract_strided_slice %92 {offsets = [0, 0], sizes = [1, 64], strides = [1, 1]} : vector<1x128xf32> to vector<1x64xf32>
    %94 = arith.truncf %93 : vector<1x64xf32> to vector<1x64xbf16>
    %c352_28 = arith.constant 352 : index
    %c0_29 = arith.constant 0 : index
    %95 = vector.load %arg1[%c352_28, %c0_29] : memref<832x128xbf16, #tpu.memory_space<vmem>>, vector<64x128xbf16>
    %cst_30 = arith.constant dense<0.000000e+00> : vector<1x128xf32>
    %96 = tpu.matmul %94, %95, %cst_30 {dimension_numbers = #tpu.dot_dimension_numbers<[1], [0], [0], [1], [0, 0, 1, 1], [], []>} : vector<1x64xbf16>, vector<64x128xbf16>, vector<1x128xf32> -> vector<1x128xf32>
    %97 = vector.extract_strided_slice %74 {offsets = [2, 0], sizes = [1, 128], strides = [1, 1]} : vector<8x128xf32> to vector<1x128xf32>
    %98 = arith.addf %96, %97 : vector<1x128xf32>
    %99 = arith.addf %98, %75 : vector<1x128xf32>
    %100 = math.tanh %99 : vector<1x128xf32>
    %101 = vector.extract_strided_slice %100 {offsets = [0, 0], sizes = [1, 64], strides = [1, 1]} : vector<1x128xf32> to vector<1x64xf32>
    %102 = arith.truncf %101 : vector<1x64xf32> to vector<1x64xbf16>
    %c416 = arith.constant 416 : index
    %c0_31 = arith.constant 0 : index
    %103 = vector.load %arg1[%c416, %c0_31] : memref<832x128xbf16, #tpu.memory_space<vmem>>, vector<64x128xbf16>
    %cst_32 = arith.constant dense<0.000000e+00> : vector<1x128xf32>
    %104 = tpu.matmul %102, %103, %cst_32 {dimension_numbers = #tpu.dot_dimension_numbers<[1], [0], [0], [1], [0, 0, 1, 1], [], []>} : vector<1x64xbf16>, vector<64x128xbf16>, vector<1x128xf32> -> vector<1x128xf32>
    %105 = vector.extract_strided_slice %1 {offsets = [9, 0], sizes = [1, 128], strides = [1, 1]} : vector<16x128xf32> to vector<1x128xf32>
    %106 = arith.addf %104, %105 : vector<1x128xf32>
    %107 = math.tanh %106 : vector<1x128xf32>
    %108 = vector.extract_strided_slice %107 {offsets = [0, 0], sizes = [1, 64], strides = [1, 1]} : vector<1x128xf32> to vector<1x64xf32>
    %109 = arith.truncf %108 : vector<1x64xf32> to vector<1x64xbf16>
    %c480 = arith.constant 480 : index
    %c0_33 = arith.constant 0 : index
    %110 = vector.load %arg1[%c480, %c0_33] : memref<832x128xbf16, #tpu.memory_space<vmem>>, vector<64x128xbf16>
    %cst_34 = arith.constant dense<0.000000e+00> : vector<1x128xf32>
    %111 = tpu.matmul %109, %110, %cst_34 {dimension_numbers = #tpu.dot_dimension_numbers<[1], [0], [0], [1], [0, 0, 1, 1], [], []>} : vector<1x64xbf16>, vector<64x128xbf16>, vector<1x128xf32> -> vector<1x128xf32>
    %112 = vector.extract_strided_slice %1 {offsets = [10, 0], sizes = [1, 128], strides = [1, 1]} : vector<16x128xf32> to vector<1x128xf32>
    %113 = arith.addf %111, %112 : vector<1x128xf32>
    %114 = math.tanh %113 : vector<1x128xf32>
    %115 = vector.extract_strided_slice %114 {offsets = [0, 0], sizes = [1, 64], strides = [1, 1]} : vector<1x128xf32> to vector<1x64xf32>
    %116 = arith.truncf %115 : vector<1x64xf32> to vector<1x64xbf16>
    %c544 = arith.constant 544 : index
    %c0_35 = arith.constant 0 : index
    %117 = vector.load %arg1[%c544, %c0_35] : memref<832x128xbf16, #tpu.memory_space<vmem>>, vector<64x128xbf16>
    %cst_36 = arith.constant dense<0.000000e+00> : vector<1x128xf32>
    %118 = tpu.matmul %116, %117, %cst_36 {dimension_numbers = #tpu.dot_dimension_numbers<[1], [0], [0], [1], [0, 0, 1, 1], [], []>} : vector<1x64xbf16>, vector<64x128xbf16>, vector<1x128xf32> -> vector<1x128xf32>
    %119 = vector.extract_strided_slice %1 {offsets = [11, 0], sizes = [1, 128], strides = [1, 1]} : vector<16x128xf32> to vector<1x128xf32>
    %120 = arith.addf %118, %119 : vector<1x128xf32>
    %121 = math.tanh %120 : vector<1x128xf32>
    %122 = vector.extract_strided_slice %121 {offsets = [0, 0], sizes = [1, 64], strides = [1, 1]} : vector<1x128xf32> to vector<1x64xf32>
    %123 = arith.truncf %122 : vector<1x64xf32> to vector<1x64xbf16>
    %c608 = arith.constant 608 : index
    %c0_37 = arith.constant 0 : index
    %124 = vector.load %arg1[%c608, %c0_37] : memref<832x128xbf16, #tpu.memory_space<vmem>>, vector<64x128xbf16>
    %cst_38 = arith.constant dense<0.000000e+00> : vector<1x128xf32>
    %125 = tpu.matmul %123, %124, %cst_38 {dimension_numbers = #tpu.dot_dimension_numbers<[1], [0], [0], [1], [0, 0, 1, 1], [], []>} : vector<1x64xbf16>, vector<64x128xbf16>, vector<1x128xf32> -> vector<1x128xf32>
    %126 = vector.extract_strided_slice %1 {offsets = [12, 0], sizes = [1, 128], strides = [1, 1]} : vector<16x128xf32> to vector<1x128xf32>
    %127 = arith.addf %125, %126 : vector<1x128xf32>
    %128 = math.tanh %127 : vector<1x128xf32>
    %129 = vector.extract_strided_slice %128 {offsets = [0, 0], sizes = [1, 64], strides = [1, 1]} : vector<1x128xf32> to vector<1x64xf32>
    %130 = arith.truncf %129 : vector<1x64xf32> to vector<1x64xbf16>
    %c672 = arith.constant 672 : index
    %c0_39 = arith.constant 0 : index
    %131 = vector.load %arg1[%c672, %c0_39] : memref<832x128xbf16, #tpu.memory_space<vmem>>, vector<64x128xbf16>
    %cst_40 = arith.constant dense<0.000000e+00> : vector<1x128xf32>
    %132 = tpu.matmul %130, %131, %cst_40 {dimension_numbers = #tpu.dot_dimension_numbers<[1], [0], [0], [1], [0, 0, 1, 1], [], []>} : vector<1x64xbf16>, vector<64x128xbf16>, vector<1x128xf32> -> vector<1x128xf32>
    %133 = vector.extract_strided_slice %1 {offsets = [13, 0], sizes = [1, 128], strides = [1, 1]} : vector<16x128xf32> to vector<1x128xf32>
    %134 = arith.addf %132, %133 : vector<1x128xf32>
    %135 = math.tanh %134 : vector<1x128xf32>
    %136 = vector.extract_strided_slice %135 {offsets = [0, 0], sizes = [1, 64], strides = [1, 1]} : vector<1x128xf32> to vector<1x64xf32>
    %137 = arith.truncf %136 : vector<1x64xf32> to vector<1x64xbf16>
    %c736 = arith.constant 736 : index
    %c0_41 = arith.constant 0 : index
    %138 = vector.load %arg1[%c736, %c0_41] : memref<832x128xbf16, #tpu.memory_space<vmem>>, vector<64x128xbf16>
    %cst_42 = arith.constant dense<0.000000e+00> : vector<1x128xf32>
    %139 = tpu.matmul %137, %138, %cst_42 {dimension_numbers = #tpu.dot_dimension_numbers<[1], [0], [0], [1], [0, 0, 1, 1], [], []>} : vector<1x64xbf16>, vector<64x128xbf16>, vector<1x128xf32> -> vector<1x128xf32>
    %140 = vector.extract_strided_slice %1 {offsets = [14, 0], sizes = [1, 128], strides = [1, 1]} : vector<16x128xf32> to vector<1x128xf32>
    %141 = arith.addf %139, %140 : vector<1x128xf32>
    %142 = math.tanh %141 : vector<1x128xf32>
    %143 = vector.extract_strided_slice %142 {offsets = [0, 0], sizes = [1, 16], strides = [1, 1]} : vector<1x128xf32> to vector<1x16xf32>
    %144 = arith.truncf %143 : vector<1x16xf32> to vector<1x16xbf16>
    %c800 = arith.constant 800 : index
    %c0_43 = arith.constant 0 : index
    %145 = vector.load %arg1[%c800, %c0_43] : memref<832x128xbf16, #tpu.memory_space<vmem>>, vector<16x128xbf16>
    %cst_44 = arith.constant dense<0.000000e+00> : vector<1x128xf32>
    %146 = tpu.matmul %144, %145, %cst_44 {dimension_numbers = #tpu.dot_dimension_numbers<[1], [0], [0], [1], [0, 0, 1, 1], [], []>} : vector<1x16xbf16>, vector<16x128xbf16>, vector<1x128xf32> -> vector<1x128xf32>
    %147 = vector.extract_strided_slice %1 {offsets = [15, 0], sizes = [1, 128], strides = [1, 1]} : vector<16x128xf32> to vector<1x128xf32>
    %148 = arith.addf %146, %147 : vector<1x128xf32>
    %c0_45 = arith.constant 0 : index
    %c0_46 = arith.constant 0 : index
    %149 = vector.load %arg2[%c0_45, %c0_46] : memref<1x128xf32, #tpu.memory_space<vmem>>, vector<1x128xf32>
    tpu.vector_store %arg2[%c0_45, %c0_46], %148 {strides = array<i32>} : memref<1x128xf32, #tpu.memory_space<vmem>>, vector<1x128xf32>,
    return
  }
}

</mosaic_0001>

<llo_original>
// kernel: point_clouds_cnn_forward.1
$region0: #{point_clouds_cnn_forward.1}
  #allocation0 [shape = 'u32[]', space=smem, size = 0x4, offset = 0x4, fixed_abs, tag = 'smem constant byte address 0x4 - core index']
  #allocation1 [shape = 'u32[144,128]{1,0:T(1,128)}', space=vmem, size = 0x12000, scoped, tag = 'internal scratch']
  %s0 = inlined_call_operand.vmem [shape: f32[8,128], index: 0, kind: input, shape index: {}]
  %s1 = inlined_call_operand.hbm [shape: bf16[832,128], index: 1, kind: input, shape index: {}]
  %s2 = inlined_call_operand.vmem [shape: f32[1,128], index: 2, kind: output, shape index: {}]
  %s3 = sld [smem:[#allocation0]]
  $region22: #{point_clouds_cnn_forward.1} parent=0
    _
  %s5 = ssub.s32 1, %s3
  %s6 = scalar_select 0, %s5, %s3
  $region1: #{point_clouds_cnn_forward.1} parent=0
    #allocation2 [shape = 'u8[212992]{0}', space=vmem, size = 0x34000, scoped, tag = 'input window, operand 1, single buffered']
    #allocation3 [shape = 's32[1]{0}', space=sflag, size = 0x4, scoped, tag = 'scoped memory for point_clouds_cnn_forward.1']
    %7 = vsyncpa [#allocation3], 0
    // Predicated region
    $region2: #{point_clouds_cnn_forward.1} parent=1 // pred_check
      _
    $region3: #{point_clouds_cnn_forward.1} parent=1 // pred_check_branch
      %9 = sbr.rel (0) target = $region5
    $region4: #{point_clouds_cnn_forward.1} parent=1 // pred_region
      _
    $region5: #{point_clouds_cnn_forward.1} parent=1 // pred_fallthru
      _
    // Predicated region
    $region6: #{point_clouds_cnn_forward.1} parent=1 // pred_check
      _
    $region7: #{point_clouds_cnn_forward.1} parent=1 // pred_check_branch
      %11 = sbr.rel (0) target = $region9
    $region8: #{point_clouds_cnn_forward.1} parent=1 // pred_region
      %s13 = ssub.s32 6656, 6656
      %14 = vsyncadd [#allocation3], %s13
      %s15 = sshll.u32 [#allocation2], 4
      %s16 = int_to_ptr.vmem [resolvable:$true] %s15
      %21 = dma.hbm_to_vmem [thread:$0]  %s1, 6656, %s16, [#allocation3], 64, 64, 4
    $region9: #{point_clouds_cnn_forward.1} parent=1 // pred_fallthru
      _
    // Predicated region
    $region10: #{point_clouds_cnn_forward.1} parent=1 // pred_check
      _
    $region11: #{point_clouds_cnn_forward.1} parent=1 // pred_check_branch
      %23 = sbr.rel (0) target = $region13
    $region12: #{point_clouds_cnn_forward.1} parent=1 // pred_region
      %24 = dma.done [#allocation3], 6656
    $region13: #{point_clouds_cnn_forward.1} parent=1 // pred_fallthru
      _
    %v26 = vld [vmem:[#allocation2 + $0x198] sm:$0xf]
    %v27 = vld [vmem:[#allocation2 + $0x19c] sm:$0xf]
    %v28 = vunpack.c.l.bf16 %v26
    %v29 = vunpack.c.l.bf16 %v27
    %v30 = vld [vmem:[%s0] sm:$0xff]
    %v31 = vpack.c.bf16 %v30, %v30
    %v32 = vld [vmem:[#allocation2] sm:$0xf]
    %v33 = vld [vmem:[#allocation2 + $0x4] sm:$0xf]
    %v34 = vld [vmem:[#allocation2 + $0x8] sm:$0xf]
    %v35 = vld [vmem:[#allocation2 + $0xc] sm:$0xf]
    %v40 = vunpack.c.l.b16 %v32
    %v41 = vunpack.c.l.b16 %v33
    %v42 = vunpack.c.l.b16 %v34
    %v43 = vunpack.c.l.b16 %v35
    %v44 = vpack.c.b16 %v41, %v40
    %v45 = vpack.c.b16 %v43, %v42
    %vm48 = vcmask 261120
    %v50 = vsel %vm48, %v31, 0
    %52 = vmatprep.subr.bf16.mxu0 0
    %53 = vmatpush1.bf16.msra.mxu0 %v44
    %54 = vmatprep.subr.bf16.mxu0 0
    %55 = vmatpush1.bf16.msra.mxu0 %v45
    %56 = vmatprep.subr.bf16.mxu0 0
    %57 = vmatpush1.bf16.msra.mxu0 0
    %58 = vmatprep.subr.bf16.mxu0 0
    %59 = vmatpush1.bf16.msra.mxu0 0
    %60 = vmatprep.subr.bf16.mxu0 0
    %61 = vmatpush1.bf16.msra.mxu0 0
    %62 = vmatprep.subr.bf16.mxu0 0
    %63 = vmatpush1.bf16.msra.mxu0 0
    %64 = vmatprep.subr.bf16.mxu0 0
    %65 = vmatpush1.bf16.msra.mxu0 0
    %66 = vmatprep.subr.bf16.mxu0 0
    %67 = vmatpush1.bf16.msra.mxu0 0
    %68 = vmatprep.subr.bf16.mxu0 0
    %69 = vmatpush1.bf16.msra.mxu0 0
    %70 = vmatprep.subr.bf16.mxu0 0
    %71 = vmatpush1.bf16.msra.mxu0 0
    %72 = vmatprep.subr.bf16.mxu0 0
    %73 = vmatpush1.bf16.msra.mxu0 0
    %74 = vmatprep.subr.bf16.mxu0 0
    %75 = vmatpush1.bf16.msra.mxu0 0
    %76 = vmatprep.subr.bf16.mxu0 0
    %77 = vmatpush1.bf16.msra.mxu0 0
    %78 = vmatprep.subr.bf16.mxu0 0
    %79 = vmatpush1.bf16.msra.mxu0 0
    %80 = vmatprep.subr.bf16.mxu0 0
    %81 = vmatpush1.bf16.msra.mxu0 0
    %82 = vmatprep.subr.bf16.mxu0 0
    %83 = vmatpush1.bf16.msra.mxu0 0
    %84 = vmatprep.mubr.bf16.mxu0 0
    %85 = vmatmul.mubr.bf16.gmra.mrb[0].mxu0 %v50
    %v86 = vpop.f32.mrb[0].mxu0
    %v87 = vadd.f32 0.0, %v86
    %v88 = vpop.f32.mrb[0].mxu0
    %v89 = vpop.f32.mrb[0].mxu0
    %v90 = vpop.f32.mrb[0].mxu0
    %91 = vdwg.mxu0
    %v92 = vtanh.pop %v87
    %v93 = vpack.c.bf16 %v92, %v92
    %v94 = vld [vmem:[#allocation2 + $0x10] sm:$0xf]
    %v95 = vld [vmem:[#allocation2 + $0x14] sm:$0xf]
    %v96 = vlaneseq
    %v97 = vshrl.u32 %v96, 7
    %v98 = vsub.s32 0, %v97
    %v99 = vrot.slane %v28, %v98
    %v102 = vunpack.c.l.b16 %v94
    %v103 = vunpack.c.l.b16 %v95
    %v104 = vpack.c.b16 %v103, %v102
    %vm106 = vcmask 130048
    %v108 = vsel %vm106, %v93, 0
    %110 = vmatprep.subr.bf16.mxu0 0
    %111 = vmatpush1.bf16.msra.mxu0 %v104
    %112 = vmatprep.subr.bf16.mxu0 0
    %113 = vmatpush1.bf16.msra.mxu0 0
    %114 = vmatprep.subr.bf16.mxu0 0
    %115 = vmatpush1.bf16.msra.mxu0 0
    %116 = vmatprep.subr.bf16.mxu0 0
    %117 = vmatpush1.bf16.msra.mxu0 0
    %118 = vmatprep.subr.bf16.mxu0 0
    %119 = vmatpush1.bf16.msra.mxu0 0
    %120 = vmatprep.subr.bf16.mxu0 0
    %121 = vmatpush1.bf16.msra.mxu0 0
    %122 = vmatprep.subr.bf16.mxu0 0
    %123 = vmatpush1.bf16.msra.mxu0 0
    %124 = vmatprep.subr.bf16.mxu0 0
    %125 = vmatpush1.bf16.msra.mxu0 0
    %126 = vmatprep.subr.bf16.mxu0 0
    %127 = vmatpush1.bf16.msra.mxu0 0
    %128 = vmatprep.subr.bf16.mxu0 0
    %129 = vmatpush1.bf16.msra.mxu0 0
    %130 = vmatprep.subr.bf16.mxu0 0
    %131 = vmatpush1.bf16.msra.mxu0 0
    %132 = vmatprep.subr.bf16.mxu0 0
    %133 = vmatpush1.bf16.msra.mxu0 0
    %134 = vmatprep.subr.bf16.mxu0 0
    %135 = vmatpush1.bf16.msra.mxu0 0
    %136 = vmatprep.subr.bf16.mxu0 0
    %137 = vmatpush1.bf16.msra.mxu0 0
    %138 = vmatprep.subr.bf16.mxu0 0
    %139 = vmatpush1.bf16.msra.mxu0 0
    %140 = vmatprep.subr.bf16.mxu0 0
    %141 = vmatpush1.bf16.msra.mxu0 0
    %142 = vmatprep.mubr.bf16.mxu0 0
    %143 = vmatmul.mubr.bf16.gmra.mrb[0].mxu0 %v108
    %v144 = vpop.f32.mrb[0].mxu0
    %v145 = vadd.f32 %v99, %v144
    %v146 = vpop.f32.mrb[0].mxu0
    %v147 = vpop.f32.mrb[0].mxu0
    %v148 = vpop.f32.mrb[0].mxu0
    %149 = vdwg.mxu0
    %v150 = vtanh.pop %v145
    %v151 = vpack.c.bf16 %v150, %v150
    %v152 = vld [vmem:[#allocation2 + $0x18] sm:$0xf]
    %v153 = vld [vmem:[#allocation2 + $0x1c] sm:$0xf]
    %v154 = vlaneseq
    %v155 = vshrl.u32 %v154, 7
    %v156 = vsub.s32 1, %v155
    %v157 = vrot.slane %v28, %v156
    %v160 = vunpack.c.l.b16 %v152
    %v161 = vunpack.c.l.b16 %v153
    %v162 = vpack.c.b16 %v161, %v160
    %v165 = vsel %vm106, %v151, 0
    %167 = vmatprep.subr.bf16.mxu0 0
    %168 = vmatpush1.bf16.msra.mxu0 %v162
    %169 = vmatprep.subr.bf16.mxu0 0
    %170 = vmatpush1.bf16.msra.mxu0 0
    %171 = vmatprep.subr.bf16.mxu0 0
    %172 = vmatpush1.bf16.msra.mxu0 0
    %173 = vmatprep.subr.bf16.mxu0 0
    %174 = vmatpush1.bf16.msra.mxu0 0
    %175 = vmatprep.subr.bf16.mxu0 0
    %176 = vmatpush1.bf16.msra.mxu0 0
    %177 = vmatprep.subr.bf16.mxu0 0
    %178 = vmatpush1.bf16.msra.mxu0 0
    %179 = vmatprep.subr.bf16.mxu0 0
    %180 = vmatpush1.bf16.msra.mxu0 0
    %181 = vmatprep.subr.bf16.mxu0 0
    %182 = vmatpush1.bf16.msra.mxu0 0
    %183 = vmatprep.subr.bf16.mxu0 0
    %184 = vmatpush1.bf16.msra.mxu0 0
    %185 = vmatprep.subr.bf16.mxu0 0
    %186 = vmatpush1.bf16.msra.mxu0 0
    %187 = vmatprep.subr.bf16.mxu0 0
    %188 = vmatpush1.bf16.msra.mxu0 0
    %189 = vmatprep.subr.bf16.mxu0 0
    %190 = vmatpush1.bf16.msra.mxu0 0
    %191 = vmatprep.subr.bf16.mxu0 0
    %192 = vmatpush1.bf16.msra.mxu0 0
    %193 = vmatprep.subr.bf16.mxu0 0
    %194 = vmatpush1.bf16.msra.mxu0 0
    %195 = vmatprep.subr.bf16.mxu0 0
    %196 = vmatpush1.bf16.msra.mxu0 0
    %197 = vmatprep.subr.bf16.mxu0 0
    %198 = vmatpush1.bf16.msra.mxu0 0
    %199 = vmatprep.mubr.bf16.mxu0 0
    %200 = vmatmul.mubr.bf16.gmra.mrb[0].mxu0 %v165
    %v201 = vpop.f32.mrb[0].mxu0
    %v202 = vadd.f32 %v157, %v201
    %v203 = vpop.f32.mrb[0].mxu0
    %v204 = vpop.f32.mrb[0].mxu0
    %v205 = vpop.f32.mrb[0].mxu0
    %206 = vdwg.mxu0
    %v207 = vtanh.pop %v202
    %v208 = vpack.c.bf16 %v207, %v207
    %v209 = vld [vmem:[#allocation2 + $0x20] sm:$0xf]
    %v210 = vld [vmem:[#allocation2 + $0x24] sm:$0xf]
    %v211 = vlaneseq
    %v212 = vshrl.u32 %v211, 7
    %v213 = vsub.s32 2, %v212
    %v214 = vrot.slane %v28, %v213
    %v217 = vunpack.c.l.b16 %v209
    %v218 = vunpack.c.l.b16 %v210
    %v219 = vpack.c.b16 %v218, %v217
    %v222 = vsel %vm106, %v208, 0
    %224 = vmatprep.subr.bf16.mxu0 0
    %225 = vmatpush1.bf16.msra.mxu0 %v219
    %226 = vmatprep.subr.bf16.mxu0 0
    %227 = vmatpush1.bf16.msra.mxu0 0
    %228 = vmatprep.subr.bf16.mxu0 0
    %229 = vmatpush1.bf16.msra.mxu0 0
    %230 = vmatprep.subr.bf16.mxu0 0
    %231 = vmatpush1.bf16.msra.mxu0 0
    %232 = vmatprep.subr.bf16.mxu0 0
    %233 = vmatpush1.bf16.msra.mxu0 0
    %234 = vmatprep.subr.bf16.mxu0 0
    %235 = vmatpush1.bf16.msra.mxu0 0
    %236 = vmatprep.subr.bf16.mxu0 0
    %237 = vmatpush1.bf16.msra.mxu0 0
    %238 = vmatprep.subr.bf16.mxu0 0
    %239 = vmatpush1.bf16.msra.mxu0 0
    %240 = vmatprep.subr.bf16.mxu0 0
    %241 = vmatpush1.bf16.msra.mxu0 0
    %242 = vmatprep.subr.bf16.mxu0 0
    %243 = vmatpush1.bf16.msra.mxu0 0
    %244 = vmatprep.subr.bf16.mxu0 0
    %245 = vmatpush1.bf16.msra.mxu0 0
    %246 = vmatprep.subr.bf16.mxu0 0
    %247 = vmatpush1.bf16.msra.mxu0 0
    %248 = vmatprep.subr.bf16.mxu0 0
    %249 = vmatpush1.bf16.msra.mxu0 0
    %250 = vmatprep.subr.bf16.mxu0 0
    %251 = vmatpush1.bf16.msra.mxu0 0
    %252 = vmatprep.subr.bf16.mxu0 0
    %253 = vmatpush1.bf16.msra.mxu0 0
    %254 = vmatprep.subr.bf16.mxu0 0
    %255 = vmatpush1.bf16.msra.mxu0 0
    %256 = vmatprep.mubr.bf16.mxu0 0
    %257 = vmatmul.mubr.bf16.gmra.mrb[0].mxu0 %v222
    %v258 = vpop.f32.mrb[0].mxu0
    %v259 = vadd.f32 %v214, %v258
    %v260 = vpop.f32.mrb[0].mxu0
    %v261 = vpop.f32.mrb[0].mxu0
    %v262 = vpop.f32.mrb[0].mxu0
    %263 = vdwg.mxu0
    %v264 = vtanh.pop %v259
    %v265 = vpack.c.bf16 %v264, %v264
    %v266 = vld [vmem:[#allocation2 + $0x28] sm:$0xf]
    %v267 = vld [vmem:[#allocation2 + $0x2c] sm:$0xf]
    %v268 = vlaneseq
    %v269 = vshrl.u32 %v268, 7
    %v270 = vsub.s32 3, %v269
    %v271 = vrot.slane %v28, %v270
    %v274 = vunpack.c.l.b16 %v266
    %v275 = vunpack.c.l.b16 %v267
    %v276 = vpack.c.b16 %v275, %v274
    %v279 = vsel %vm106, %v265, 0
    %281 = vmatprep.subr.bf16.mxu0 0
    %282 = vmatpush1.bf16.msra.mxu0 %v276
    %283 = vmatprep.subr.bf16.mxu0 0
    %284 = vmatpush1.bf16.msra.mxu0 0
    %285 = vmatprep.subr.bf16.mxu0 0
    %286 = vmatpush1.bf16.msra.mxu0 0
    %287 = vmatprep.subr.bf16.mxu0 0
    %288 = vmatpush1.bf16.msra.mxu0 0
    %289 = vmatprep.subr.bf16.mxu0 0
    %290 = vmatpush1.bf16.msra.mxu0 0
    %291 = vmatprep.subr.bf16.mxu0 0
    %292 = vmatpush1.bf16.msra.mxu0 0
    %293 = vmatprep.subr.bf16.mxu0 0
    %294 = vmatpush1.bf16.msra.mxu0 0
    %295 = vmatprep.subr.bf16.mxu0 0
    %296 = vmatpush1.bf16.msra.mxu0 0
    %297 = vmatprep.subr.bf16.mxu0 0
    %298 = vmatpush1.bf16.msra.mxu0 0
    %299 = vmatprep.subr.bf16.mxu0 0
    %300 = vmatpush1.bf16.msra.mxu0 0
    %301 = vmatprep.subr.bf16.mxu0 0
    %302 = vmatpush1.bf16.msra.mxu0 0
    %303 = vmatprep.subr.bf16.mxu0 0
    %304 = vmatpush1.bf16.msra.mxu0 0
    %305 = vmatprep.subr.bf16.mxu0 0
    %306 = vmatpush1.bf16.msra.mxu0 0
    %307 = vmatprep.subr.bf16.mxu0 0
    %308 = vmatpush1.bf16.msra.mxu0 0
    %309 = vmatprep.subr.bf16.mxu0 0
    %310 = vmatpush1.bf16.msra.mxu0 0
    %311 = vmatprep.subr.bf16.mxu0 0
    %312 = vmatpush1.bf16.msra.mxu0 0
    %313 = vmatprep.mubr.bf16.mxu0 0
    %314 = vmatmul.mubr.bf16.gmra.mrb[0].mxu0 %v279
    %v315 = vpop.f32.mrb[0].mxu0
    %v316 = vadd.f32 %v271, %v315
    %v317 = vpop.f32.mrb[0].mxu0
    %v318 = vpop.f32.mrb[0].mxu0
    %v319 = vpop.f32.mrb[0].mxu0
    %320 = vdwg.mxu0
    %v321 = vtanh.pop %v316
    %v322 = vpack.c.bf16 %v321, %v321
    %v323 = vld [vmem:[#allocation2 + $0x30] sm:$0xf]
    %v324 = vld [vmem:[#allocation2 + $0x34] sm:$0xf]
    %v325 = vlaneseq
    %v326 = vshrl.u32 %v325, 7
    %v327 = vsub.s32 4, %v326
    %v328 = vrot.slane %v28, %v327
    %v331 = vunpack.c.l.b16 %v323
    %v332 = vunpack.c.l.b16 %v324
    %v333 = vpack.c.b16 %v332, %v331
    %v336 = vsel %vm106, %v322, 0
    %338 = vmatprep.subr.bf16.mxu0 0
    %339 = vmatpush1.bf16.msra.mxu0 %v333
    %340 = vmatprep.subr.bf16.mxu0 0
    %341 = vmatpush1.bf16.msra.mxu0 0
    %342 = vmatprep.subr.bf16.mxu0 0
    %343 = vmatpush1.bf16.msra.mxu0 0
    %344 = vmatprep.subr.bf16.mxu0 0
    %345 = vmatpush1.bf16.msra.mxu0 0
    %346 = vmatprep.subr.bf16.mxu0 0
    %347 = vmatpush1.bf16.msra.mxu0 0
    %348 = vmatprep.subr.bf16.mxu0 0
    %349 = vmatpush1.bf16.msra.mxu0 0
    %350 = vmatprep.subr.bf16.mxu0 0
    %351 = vmatpush1.bf16.msra.mxu0 0
    %352 = vmatprep.subr.bf16.mxu0 0
    %353 = vmatpush1.bf16.msra.mxu0 0
    %354 = vmatprep.subr.bf16.mxu0 0
    %355 = vmatpush1.bf16.msra.mxu0 0
    %356 = vmatprep.subr.bf16.mxu0 0
    %357 = vmatpush1.bf16.msra.mxu0 0
    %358 = vmatprep.subr.bf16.mxu0 0
    %359 = vmatpush1.bf16.msra.mxu0 0
    %360 = vmatprep.subr.bf16.mxu0 0
    %361 = vmatpush1.bf16.msra.mxu0 0
    %362 = vmatprep.subr.bf16.mxu0 0
    %363 = vmatpush1.bf16.msra.mxu0 0
    %364 = vmatprep.subr.bf16.mxu0 0
    %365 = vmatpush1.bf16.msra.mxu0 0
    %366 = vmatprep.subr.bf16.mxu0 0
    %367 = vmatpush1.bf16.msra.mxu0 0
    %368 = vmatprep.subr.bf16.mxu0 0
    %369 = vmatpush1.bf16.msra.mxu0 0
    %370 = vmatprep.mubr.bf16.mxu0 0
    %371 = vmatmul.mubr.bf16.gmra.mrb[0].mxu0 %v336
    %v372 = vpop.f32.mrb[0].mxu0
    %v373 = vadd.f32 %v328, %v372
    %v374 = vpop.f32.mrb[0].mxu0
    %v375 = vpop.f32.mrb[0].mxu0
    %v376 = vpop.f32.mrb[0].mxu0
    %377 = vdwg.mxu0
    %v378 = vtanh.pop %v373
    %v379 = vpack.c.bf16 %v378, %v378
    %v380 = vld [vmem:[#allocation2 + $0x38] sm:$0xf]
    %v381 = vld [vmem:[#allocation2 + $0x3c] sm:$0xf]
    %v382 = vlaneseq
    %v383 = vshrl.u32 %v382, 7
    %v384 = vsub.s32 5, %v383
    %v385 = vrot.slane %v28, %v384
    %v388 = vunpack.c.l.b16 %v380
    %v389 = vunpack.c.l.b16 %v381
    %v390 = vpack.c.b16 %v389, %v388
    %v393 = vsel %vm106, %v379, 0
    %395 = vmatprep.subr.bf16.mxu0 0
    %396 = vmatpush1.bf16.msra.mxu0 %v390
    %397 = vmatprep.subr.bf16.mxu0 0
    %398 = vmatpush1.bf16.msra.mxu0 0
    %399 = vmatprep.subr.bf16.mxu0 0
    %400 = vmatpush1.bf16.msra.mxu0 0
    %401 = vmatprep.subr.bf16.mxu0 0
    %402 = vmatpush1.bf16.msra.mxu0 0
    %403 = vmatprep.subr.bf16.mxu0 0
    %404 = vmatpush1.bf16.msra.mxu0 0
    %405 = vmatprep.subr.bf16.mxu0 0
    %406 = vmatpush1.bf16.msra.mxu0 0
    %407 = vmatprep.subr.bf16.mxu0 0
    %408 = vmatpush1.bf16.msra.mxu0 0
    %409 = vmatprep.subr.bf16.mxu0 0
    %410 = vmatpush1.bf16.msra.mxu0 0
    %411 = vmatprep.subr.bf16.mxu0 0
    %412 = vmatpush1.bf16.msra.mxu0 0
    %413 = vmatprep.subr.bf16.mxu0 0
    %414 = vmatpush1.bf16.msra.mxu0 0
    %415 = vmatprep.subr.bf16.mxu0 0
    %416 = vmatpush1.bf16.msra.mxu0 0
    %417 = vmatprep.subr.bf16.mxu0 0
    %418 = vmatpush1.bf16.msra.mxu0 0
    %419 = vmatprep.subr.bf16.mxu0 0
    %420 = vmatpush1.bf16.msra.mxu0 0
    %421 = vmatprep.subr.bf16.mxu0 0
    %422 = vmatpush1.bf16.msra.mxu0 0
    %423 = vmatprep.subr.bf16.mxu0 0
    %424 = vmatpush1.bf16.msra.mxu0 0
    %425 = vmatprep.subr.bf16.mxu0 0
    %426 = vmatpush1.bf16.msra.mxu0 0
    %427 = vmatprep.mubr.bf16.mxu0 0
    %428 = vmatmul.mubr.bf16.gmra.mrb[0].mxu0 %v393
    %v429 = vpop.f32.mrb[0].mxu0
    %v430 = vadd.f32 %v385, %v429
    %v431 = vpop.f32.mrb[0].mxu0
    %v432 = vpop.f32.mrb[0].mxu0
    %v433 = vpop.f32.mrb[0].mxu0
    %434 = vdwg.mxu0
    %v435 = vtanh.pop %v430
    %v436 = vpack.c.bf16 %v435, %v435
    %v437 = vld [vmem:[#allocation2 + $0x40] sm:$0xf]
    %v438 = vld [vmem:[#allocation2 + $0x44] sm:$0xf]
    %v439 = vld [vmem:[#allocation2 + $0x48] sm:$0xf]
    %v440 = vld [vmem:[#allocation2 + $0x4c] sm:$0xf]
    %v441 = vld [vmem:[#allocation2 + $0x50] sm:$0xf]
    %v442 = vld [vmem:[#allocation2 + $0x54] sm:$0xf]
    %v443 = vld [vmem:[#allocation2 + $0x58] sm:$0xf]
    %v444 = vld [vmem:[#allocation2 + $0x5c] sm:$0xf]
    %v445 = vld [vmem:[#allocation2 + $0x60] sm:$0xf]
    %v446 = vld [vmem:[#allocation2 + $0x64] sm:$0xf]
    %v447 = vld [vmem:[#allocation2 + $0x68] sm:$0xf]
    %v448 = vld [vmem:[#allocation2 + $0x6c] sm:$0xf]
    %v449 = vld [vmem:[#allocation2 + $0x70] sm:$0xf]
    %v450 = vld [vmem:[#allocation2 + $0x74] sm:$0xf]
    %v451 = vld [vmem:[#allocation2 + $0x78] sm:$0xf]
    %v452 = vld [vmem:[#allocation2 + $0x7c] sm:$0xf]
    %v453 = vlaneseq
    %v454 = vshrl.u32 %v453, 7
    %v455 = vsub.s32 6, %v454
    %v456 = vrot.slane %v28, %v455
    %v473 = vunpack.c.l.b16 %v437
    %v474 = vunpack.c.l.b16 %v438
    %v475 = vunpack.c.l.b16 %v439
    %v476 = vunpack.c.l.b16 %v440
    %v477 = vunpack.c.l.b16 %v441
    %v478 = vunpack.c.l.b16 %v442
    %v479 = vunpack.c.l.b16 %v443
    %v480 = vunpack.c.l.b16 %v444
    %v481 = vunpack.c.l.b16 %v445
    %v482 = vunpack.c.l.b16 %v446
    %v483 = vunpack.c.l.b16 %v447
    %v484 = vunpack.c.l.b16 %v448
    %v485 = vunpack.c.l.b16 %v449
    %v486 = vunpack.c.l.b16 %v450
    %v487 = vunpack.c.l.b16 %v451
    %v488 = vunpack.c.l.b16 %v452
    %v489 = vpack.c.b16 %v474, %v473
    %v490 = vpack.c.b16 %v476, %v475
    %v491 = vpack.c.b16 %v478, %v477
    %v492 = vpack.c.b16 %v480, %v479
    %v493 = vpack.c.b16 %v482, %v481
    %v494 = vpack.c.b16 %v484, %v483
    %v495 = vpack.c.b16 %v486, %v485
    %v496 = vpack.c.b16 %v488, %v487
    %505 = vmatprep.subr.bf16.mxu0 0
    %506 = vmatpush1.bf16.msra.mxu0 %v489
    %507 = vmatprep.subr.bf16.mxu0 0
    %508 = vmatpush1.bf16.msra.mxu0 %v490
    %509 = vmatprep.subr.bf16.mxu0 0
    %510 = vmatpush1.bf16.msra.mxu0 %v491
    %511 = vmatprep.subr.bf16.mxu0 0
    %512 = vmatpush1.bf16.msra.mxu0 %v492
    %513 = vmatprep.subr.bf16.mxu0 0
    %514 = vmatpush1.bf16.msra.mxu0 %v493
    %515 = vmatprep.subr.bf16.mxu0 0
    %516 = vmatpush1.bf16.msra.mxu0 %v494
    %517 = vmatprep.subr.bf16.mxu0 0
    %518 = vmatpush1.bf16.msra.mxu0 %v495
    %519 = vmatprep.subr.bf16.mxu0 0
    %520 = vmatpush1.bf16.msra.mxu0 %v496
    %521 = vmatprep.subr.bf16.mxu0 0
    %522 = vmatpush1.bf16.msra.mxu0 0
    %523 = vmatprep.subr.bf16.mxu0 0
    %524 = vmatpush1.bf16.msra.mxu0 0
    %525 = vmatprep.subr.bf16.mxu0 0
    %526 = vmatpush1.bf16.msra.mxu0 0
    %527 = vmatprep.subr.bf16.mxu0 0
    %528 = vmatpush1.bf16.msra.mxu0 0
    %529 = vmatprep.subr.bf16.mxu0 0
    %530 = vmatpush1.bf16.msra.mxu0 0
    %531 = vmatprep.subr.bf16.mxu0 0
    %532 = vmatpush1.bf16.msra.mxu0 0
    %533 = vmatprep.subr.bf16.mxu0 0
    %534 = vmatpush1.bf16.msra.mxu0 0
    %535 = vmatprep.subr.bf16.mxu0 0
    %536 = vmatpush1.bf16.msra.mxu0 0
    %537 = vmatprep.mubr.bf16.mxu0 0
    %538 = vmatmul.mubr.bf16.gmra.mrb[0].mxu0 %v436
    %v539 = vpop.f32.mrb[0].mxu0
    %v540 = vadd.f32 %v456, %v539
    %v541 = vpop.f32.mrb[0].mxu0
    %v542 = vpop.f32.mrb[0].mxu0
    %v543 = vpop.f32.mrb[0].mxu0
    %544 = vdwg.mxu0
    %v545 = vtanh.pop %v540
    %v546 = vpack.c.bf16 %v545, %v545
    %v547 = vld [vmem:[#allocation2 + $0x80] sm:$0xf]
    %v548 = vld [vmem:[#allocation2 + $0x84] sm:$0xf]
    %v549 = vld [vmem:[#allocation2 + $0x88] sm:$0xf]
    %v550 = vld [vmem:[#allocation2 + $0x8c] sm:$0xf]
    %v551 = vld [vmem:[#allocation2 + $0x90] sm:$0xf]
    %v552 = vld [vmem:[#allocation2 + $0x94] sm:$0xf]
    %v553 = vld [vmem:[#allocation2 + $0x98] sm:$0xf]
    %v554 = vld [vmem:[#allocation2 + $0x9c] sm:$0xf]
    %v555 = vlaneseq
    %v556 = vshrl.u32 %v555, 7
    %v557 = vsub.s32 7, %v556
    %v558 = vrot.slane %v28, %v557
    %v567 = vunpack.c.l.b16 %v547
    %v568 = vunpack.c.l.b16 %v548
    %v569 = vunpack.c.l.b16 %v549
    %v570 = vunpack.c.l.b16 %v550
    %v571 = vunpack.c.l.b16 %v551
    %v572 = vunpack.c.l.b16 %v552
    %v573 = vunpack.c.l.b16 %v553
    %v574 = vunpack.c.l.b16 %v554
    %v575 = vpack.c.b16 %v568, %v567
    %v576 = vpack.c.b16 %v570, %v569
    %v577 = vpack.c.b16 %v572, %v571
    %v578 = vpack.c.b16 %v574, %v573
    %vm583 = vcmask 523264
    %v585 = vsel %vm583, %v546, 0
    %587 = vmatprep.subr.bf16.mxu0 0
    %588 = vmatpush1.bf16.msra.mxu0 %v575
    %589 = vmatprep.subr.bf16.mxu0 0
    %590 = vmatpush1.bf16.msra.mxu0 %v576
    %591 = vmatprep.subr.bf16.mxu0 0
    %592 = vmatpush1.bf16.msra.mxu0 %v577
    %593 = vmatprep.subr.bf16.mxu0 0
    %594 = vmatpush1.bf16.msra.mxu0 %v578
    %595 = vmatprep.subr.bf16.mxu0 0
    %596 = vmatpush1.bf16.msra.mxu0 0
    %597 = vmatprep.subr.bf16.mxu0 0
    %598 = vmatpush1.bf16.msra.mxu0 0
    %599 = vmatprep.subr.bf16.mxu0 0
    %600 = vmatpush1.bf16.msra.mxu0 0
    %601 = vmatprep.subr.bf16.mxu0 0
    %602 = vmatpush1.bf16.msra.mxu0 0
    %603 = vmatprep.subr.bf16.mxu0 0
    %604 = vmatpush1.bf16.msra.mxu0 0
    %605 = vmatprep.subr.bf16.mxu0 0
    %606 = vmatpush1.bf16.msra.mxu0 0
    %607 = vmatprep.subr.bf16.mxu0 0
    %608 = vmatpush1.bf16.msra.mxu0 0
    %609 = vmatprep.subr.bf16.mxu0 0
    %610 = vmatpush1.bf16.msra.mxu0 0
    %611 = vmatprep.subr.bf16.mxu0 0
    %612 = vmatpush1.bf16.msra.mxu0 0
    %613 = vmatprep.subr.bf16.mxu0 0
    %614 = vmatpush1.bf16.msra.mxu0 0
    %615 = vmatprep.subr.bf16.mxu0 0
    %616 = vmatpush1.bf16.msra.mxu0 0
    %617 = vmatprep.subr.bf16.mxu0 0
    %618 = vmatpush1.bf16.msra.mxu0 0
    %619 = vmatprep.mubr.bf16.mxu0 0
    %620 = vmatmul.mubr.bf16.gmra.mrb[0].mxu0 %v585
    %v621 = vpop.f32.mrb[0].mxu0
    %v622 = vadd.f32 %v558, %v621
    %v623 = vpop.f32.mrb[0].mxu0
    %v624 = vpop.f32.mrb[0].mxu0
    %v625 = vpop.f32.mrb[0].mxu0
    %626 = vdwg.mxu0
    %v627 = vtanh.pop %v622
    %v628 = vpack.c.bf16 %v627, %v627
    %v629 = vld [vmem:[#allocation2 + $0xa0] sm:$0xf]
    %v630 = vld [vmem:[#allocation2 + $0xa4] sm:$0xf]
    %v631 = vld [vmem:[#allocation2 + $0xa8] sm:$0xf]
    %v632 = vld [vmem:[#allocation2 + $0xac] sm:$0xf]
    %v637 = vunpack.c.l.b16 %v629
    %v638 = vunpack.c.l.b16 %v630
    %v639 = vunpack.c.l.b16 %v631
    %v640 = vunpack.c.l.b16 %v632
    %v641 = vpack.c.b16 %v638, %v637
    %v642 = vpack.c.b16 %v640, %v639
    %v646 = vsel %vm48, %v628, 0
    %648 = vmatprep.subr.bf16.mxu0 0
    %649 = vmatpush1.bf16.msra.mxu0 %v641
    %650 = vmatprep.subr.bf16.mxu0 0
    %651 = vmatpush1.bf16.msra.mxu0 %v642
    %652 = vmatprep.subr.bf16.mxu0 0
    %653 = vmatpush1.bf16.msra.mxu0 0
    %654 = vmatprep.subr.bf16.mxu0 0
    %655 = vmatpush1.bf16.msra.mxu0 0
    %656 = vmatprep.subr.bf16.mxu0 0
    %657 = vmatpush1.bf16.msra.mxu0 0
    %658 = vmatprep.subr.bf16.mxu0 0
    %659 = vmatpush1.bf16.msra.mxu0 0
    %660 = vmatprep.subr.bf16.mxu0 0
    %661 = vmatpush1.bf16.msra.mxu0 0
    %662 = vmatprep.subr.bf16.mxu0 0
    %663 = vmatpush1.bf16.msra.mxu0 0
    %664 = vmatprep.subr.bf16.mxu0 0
    %665 = vmatpush1.bf16.msra.mxu0 0
    %666 = vmatprep.subr.bf16.mxu0 0
    %667 = vmatpush1.bf16.msra.mxu0 0
    %668 = vmatprep.subr.bf16.mxu0 0
    %669 = vmatpush1.bf16.msra.mxu0 0
    %670 = vmatprep.subr.bf16.mxu0 0
    %671 = vmatpush1.bf16.msra.mxu0 0
    %672 = vmatprep.subr.bf16.mxu0 0
    %673 = vmatpush1.bf16.msra.mxu0 0
    %674 = vmatprep.subr.bf16.mxu0 0
    %675 = vmatpush1.bf16.msra.mxu0 0
    %676 = vmatprep.subr.bf16.mxu0 0
    %677 = vmatpush1.bf16.msra.mxu0 0
    %678 = vmatprep.subr.bf16.mxu0 0
    %679 = vmatpush1.bf16.msra.mxu0 0
    %680 = vmatprep.mubr.bf16.mxu0 0
    %681 = vmatmul.mubr.bf16.gmra.mrb[0].mxu0 %v646
    %v682 = vpop.f32.mrb[0].mxu0
    %v683 = vadd.f32 0.0, %v682
    %v684 = vpop.f32.mrb[0].mxu0
    %v685 = vpop.f32.mrb[0].mxu0
    %v686 = vpop.f32.mrb[0].mxu0
    %687 = vdwg.mxu0
    %v688 = vld [vmem:[#allocation2 + $0xb0] sm:$0xf]
    %v689 = vld [vmem:[#allocation2 + $0xb4] sm:$0xf]
    %v690 = vld [vmem:[#allocation2 + $0xb8] sm:$0xf]
    %v691 = vld [vmem:[#allocation2 + $0xbc] sm:$0xf]
    %v692 = vld [vmem:[#allocation2 + $0xc0] sm:$0xf]
    %v693 = vld [vmem:[#allocation2 + $0xc4] sm:$0xf]
    %v694 = vld [vmem:[#allocation2 + $0xc8] sm:$0xf]
    %v695 = vld [vmem:[#allocation2 + $0xcc] sm:$0xf]
    %v704 = vunpack.c.l.b16 %v688
    %v705 = vunpack.c.l.b16 %v689
    %v706 = vunpack.c.l.b16 %v690
    %v707 = vunpack.c.l.b16 %v691
    %v708 = vunpack.c.l.b16 %v692
    %v709 = vunpack.c.l.b16 %v693
    %v710 = vunpack.c.l.b16 %v694
    %v711 = vunpack.c.l.b16 %v695
    %v712 = vpack.c.b16 %v705, %v704
    %v713 = vpack.c.b16 %v707, %v706
    %v714 = vpack.c.b16 %v709, %v708
    %v715 = vpack.c.b16 %v711, %v710
    %v721 = vsel %vm583, 0, 0
    %723 = vmatprep.subr.bf16.mxu0 0
    %724 = vmatpush1.bf16.msra.mxu0 %v712
    %725 = vmatprep.subr.bf16.mxu0 0
    %726 = vmatpush1.bf16.msra.mxu0 %v713
    %727 = vmatprep.subr.bf16.mxu0 0
    %728 = vmatpush1.bf16.msra.mxu0 %v714
    %729 = vmatprep.subr.bf16.mxu0 0
    %730 = vmatpush1.bf16.msra.mxu0 %v715
    %731 = vmatprep.subr.bf16.mxu0 0
    %732 = vmatpush1.bf16.msra.mxu0 0
    %733 = vmatprep.subr.bf16.mxu0 0
    %734 = vmatpush1.bf16.msra.mxu0 0
    %735 = vmatprep.subr.bf16.mxu0 0
    %736 = vmatpush1.bf16.msra.mxu0 0
    %737 = vmatprep.subr.bf16.mxu0 0
    %738 = vmatpush1.bf16.msra.mxu0 0
    %739 = vmatprep.subr.bf16.mxu0 0
    %740 = vmatpush1.bf16.msra.mxu0 0
    %741 = vmatprep.subr.bf16.mxu0 0
    %742 = vmatpush1.bf16.msra.mxu0 0
    %743 = vmatprep.subr.bf16.mxu0 0
    %744 = vmatpush1.bf16.msra.mxu0 0
    %745 = vmatprep.subr.bf16.mxu0 0
    %746 = vmatpush1.bf16.msra.mxu0 0
    %747 = vmatprep.subr.bf16.mxu0 0
    %748 = vmatpush1.bf16.msra.mxu0 0
    %749 = vmatprep.subr.bf16.mxu0 0
    %750 = vmatpush1.bf16.msra.mxu0 0
    %751 = vmatprep.subr.bf16.mxu0 0
    %752 = vmatpush1.bf16.msra.mxu0 0
    %753 = vmatprep.subr.bf16.mxu0 0
    %754 = vmatpush1.bf16.msra.mxu0 0
    %755 = vmatprep.mubr.bf16.mxu0 0
    %756 = vmatmul.mubr.bf16.gmra.mrb[0].mxu0 %v721
    %v757 = vpop.f32.mrb[0].mxu0
    %v758 = vadd.f32 %v683, %v757
    %v759 = vpop.f32.mrb[0].mxu0
    %v760 = vpop.f32.mrb[0].mxu0
    %v761 = vpop.f32.mrb[0].mxu0
    %762 = vdwg.mxu0
    %v763 = vadd.f32 %v758, %v29
    %v764 = vtanh.pop %v763
    %v765 = vpack.c.bf16 %v764, %v764
    %v767 = vrot.slane %v683, 1
    %v770 = vsel %vm583, %v765, 0
    %772 = vmatprep.subr.bf16.mxu0 0
    %773 = vmatpush1.bf16.msra.mxu0 %v712
    %774 = vmatprep.subr.bf16.mxu0 0
    %775 = vmatpush1.bf16.msra.mxu0 %v713
    %776 = vmatprep.subr.bf16.mxu0 0
    %777 = vmatpush1.bf16.msra.mxu0 %v714
    %778 = vmatprep.subr.bf16.mxu0 0
    %779 = vmatpush1.bf16.msra.mxu0 %v715
    %780 = vmatprep.subr.bf16.mxu0 0
    %781 = vmatpush1.bf16.msra.mxu0 0
    %782 = vmatprep.subr.bf16.mxu0 0
    %783 = vmatpush1.bf16.msra.mxu0 0
    %784 = vmatprep.subr.bf16.mxu0 0
    %785 = vmatpush1.bf16.msra.mxu0 0
    %786 = vmatprep.subr.bf16.mxu0 0
    %787 = vmatpush1.bf16.msra.mxu0 0
    %788 = vmatprep.subr.bf16.mxu0 0
    %789 = vmatpush1.bf16.msra.mxu0 0
    %790 = vmatprep.subr.bf16.mxu0 0
    %791 = vmatpush1.bf16.msra.mxu0 0
    %792 = vmatprep.subr.bf16.mxu0 0
    %793 = vmatpush1.bf16.msra.mxu0 0
    %794 = vmatprep.subr.bf16.mxu0 0
    %795 = vmatpush1.bf16.msra.mxu0 0
    %796 = vmatprep.subr.bf16.mxu0 0
    %797 = vmatpush1.bf16.msra.mxu0 0
    %798 = vmatprep.subr.bf16.mxu0 0
    %799 = vmatpush1.bf16.msra.mxu0 0
    %800 = vmatprep.subr.bf16.mxu0 0
    %801 = vmatpush1.bf16.msra.mxu0 0
    %802 = vmatprep.subr.bf16.mxu0 0
    %803 = vmatpush1.bf16.msra.mxu0 0
    %804 = vmatprep.mubr.bf16.mxu0 0
    %805 = vmatmul.mubr.bf16.gmra.mrb[0].mxu0 %v770
    %v806 = vpop.f32.mrb[0].mxu0
    %v807 = vadd.f32 %v767, %v806
    %v808 = vpop.f32.mrb[0].mxu0
    %v809 = vpop.f32.mrb[0].mxu0
    %v810 = vpop.f32.mrb[0].mxu0
    %811 = vdwg.mxu0
    %v812 = vadd.f32 %v807, %v29
    %v813 = vtanh.pop %v812
    %v814 = vpack.c.bf16 %v813, %v813
    %v815 = vrot.slane %v683, 2
    %v818 = vsel %vm583, %v814, 0
    %820 = vmatprep.subr.bf16.mxu0 0
    %821 = vmatpush1.bf16.msra.mxu0 %v712
    %822 = vmatprep.subr.bf16.mxu0 0
    %823 = vmatpush1.bf16.msra.mxu0 %v713
    %824 = vmatprep.subr.bf16.mxu0 0
    %825 = vmatpush1.bf16.msra.mxu0 %v714
    %826 = vmatprep.subr.bf16.mxu0 0
    %827 = vmatpush1.bf16.msra.mxu0 %v715
    %828 = vmatprep.subr.bf16.mxu0 0
    %829 = vmatpush1.bf16.msra.mxu0 0
    %830 = vmatprep.subr.bf16.mxu0 0
    %831 = vmatpush1.bf16.msra.mxu0 0
    %832 = vmatprep.subr.bf16.mxu0 0
    %833 = vmatpush1.bf16.msra.mxu0 0
    %834 = vmatprep.subr.bf16.mxu0 0
    %835 = vmatpush1.bf16.msra.mxu0 0
    %836 = vmatprep.subr.bf16.mxu0 0
    %837 = vmatpush1.bf16.msra.mxu0 0
    %838 = vmatprep.subr.bf16.mxu0 0
    %839 = vmatpush1.bf16.msra.mxu0 0
    %840 = vmatprep.subr.bf16.mxu0 0
    %841 = vmatpush1.bf16.msra.mxu0 0
    %842 = vmatprep.subr.bf16.mxu0 0
    %843 = vmatpush1.bf16.msra.mxu0 0
    %844 = vmatprep.subr.bf16.mxu0 0
    %845 = vmatpush1.bf16.msra.mxu0 0
    %846 = vmatprep.subr.bf16.mxu0 0
    %847 = vmatpush1.bf16.msra.mxu0 0
    %848 = vmatprep.subr.bf16.mxu0 0
    %849 = vmatpush1.bf16.msra.mxu0 0
    %850 = vmatprep.subr.bf16.mxu0 0
    %851 = vmatpush1.bf16.msra.mxu0 0
    %852 = vmatprep.mubr.bf16.mxu0 0
    %853 = vmatmul.mubr.bf16.gmra.mrb[0].mxu0 %v818
    %v854 = vpop.f32.mrb[0].mxu0
    %v855 = vadd.f32 %v815, %v854
    %v856 = vpop.f32.mrb[0].mxu0
    %v857 = vpop.f32.mrb[0].mxu0
    %v858 = vpop.f32.mrb[0].mxu0
    %859 = vdwg.mxu0
    %v860 = vadd.f32 %v855, %v29
    %v861 = vtanh.pop %v860
    %v862 = vpack.c.bf16 %v861, %v861
    %v863 = vld [vmem:[#allocation2 + $0xd0] sm:$0xf]
    %v864 = vld [vmem:[#allocation2 + $0xd4] sm:$0xf]
    %v865 = vld [vmem:[#allocation2 + $0xd8] sm:$0xf]
    %v866 = vld [vmem:[#allocation2 + $0xdc] sm:$0xf]
    %v867 = vld [vmem:[#allocation2 + $0xe0] sm:$0xf]
    %v868 = vld [vmem:[#allocation2 + $0xe4] sm:$0xf]
    %v869 = vld [vmem:[#allocation2 + $0xe8] sm:$0xf]
    %v870 = vld [vmem:[#allocation2 + $0xec] sm:$0xf]
    %v879 = vunpack.c.l.b16 %v863
    %v880 = vunpack.c.l.b16 %v864
    %v881 = vunpack.c.l.b16 %v865
    %v882 = vunpack.c.l.b16 %v866
    %v883 = vunpack.c.l.b16 %v867
    %v884 = vunpack.c.l.b16 %v868
    %v885 = vunpack.c.l.b16 %v869
    %v886 = vunpack.c.l.b16 %v870
    %v887 = vpack.c.b16 %v880, %v879
    %v888 = vpack.c.b16 %v882, %v881
    %v889 = vpack.c.b16 %v884, %v883
    %v890 = vpack.c.b16 %v886, %v885
    %v896 = vrot.slane %v29, 1
    %v899 = vsel %vm583, %v862, 0
    %901 = vmatprep.subr.bf16.mxu0 0
    %902 = vmatpush1.bf16.msra.mxu0 %v887
    %903 = vmatprep.subr.bf16.mxu0 0
    %904 = vmatpush1.bf16.msra.mxu0 %v888
    %905 = vmatprep.subr.bf16.mxu0 0
    %906 = vmatpush1.bf16.msra.mxu0 %v889
    %907 = vmatprep.subr.bf16.mxu0 0
    %908 = vmatpush1.bf16.msra.mxu0 %v890
    %909 = vmatprep.subr.bf16.mxu0 0
    %910 = vmatpush1.bf16.msra.mxu0 0
    %911 = vmatprep.subr.bf16.mxu0 0
    %912 = vmatpush1.bf16.msra.mxu0 0
    %913 = vmatprep.subr.bf16.mxu0 0
    %914 = vmatpush1.bf16.msra.mxu0 0
    %915 = vmatprep.subr.bf16.mxu0 0
    %916 = vmatpush1.bf16.msra.mxu0 0
    %917 = vmatprep.subr.bf16.mxu0 0
    %918 = vmatpush1.bf16.msra.mxu0 0
    %919 = vmatprep.subr.bf16.mxu0 0
    %920 = vmatpush1.bf16.msra.mxu0 0
    %921 = vmatprep.subr.bf16.mxu0 0
    %922 = vmatpush1.bf16.msra.mxu0 0
    %923 = vmatprep.subr.bf16.mxu0 0
    %924 = vmatpush1.bf16.msra.mxu0 0
    %925 = vmatprep.subr.bf16.mxu0 0
    %926 = vmatpush1.bf16.msra.mxu0 0
    %927 = vmatprep.subr.bf16.mxu0 0
    %928 = vmatpush1.bf16.msra.mxu0 0
    %929 = vmatprep.subr.bf16.mxu0 0
    %930 = vmatpush1.bf16.msra.mxu0 0
    %931 = vmatprep.subr.bf16.mxu0 0
    %932 = vmatpush1.bf16.msra.mxu0 0
    %933 = vmatprep.mubr.bf16.mxu0 0
    %934 = vmatmul.mubr.bf16.gmra.mrb[0].mxu0 %v899
    %v935 = vpop.f32.mrb[0].mxu0
    %v936 = vadd.f32 %v896, %v935
    %v937 = vpop.f32.mrb[0].mxu0
    %v938 = vpop.f32.mrb[0].mxu0
    %v939 = vpop.f32.mrb[0].mxu0
    %940 = vdwg.mxu0
    %v941 = vtanh.pop %v936
    %v942 = vpack.c.bf16 %v941, %v941
    %v943 = vld [vmem:[#allocation2 + $0xf0] sm:$0xf]
    %v944 = vld [vmem:[#allocation2 + $0xf4] sm:$0xf]
    %v945 = vld [vmem:[#allocation2 + $0xf8] sm:$0xf]
    %v946 = vld [vmem:[#allocation2 + $0xfc] sm:$0xf]
    %v947 = vld [vmem:[#allocation2 + $0x100] sm:$0xf]
    %v948 = vld [vmem:[#allocation2 + $0x104] sm:$0xf]
    %v949 = vld [vmem:[#allocation2 + $0x108] sm:$0xf]
    %v950 = vld [vmem:[#allocation2 + $0x10c] sm:$0xf]
    %v959 = vunpack.c.l.b16 %v943
    %v960 = vunpack.c.l.b16 %v944
    %v961 = vunpack.c.l.b16 %v945
    %v962 = vunpack.c.l.b16 %v946
    %v963 = vunpack.c.l.b16 %v947
    %v964 = vunpack.c.l.b16 %v948
    %v965 = vunpack.c.l.b16 %v949
    %v966 = vunpack.c.l.b16 %v950
    %v967 = vpack.c.b16 %v960, %v959
    %v968 = vpack.c.b16 %v962, %v961
    %v969 = vpack.c.b16 %v964, %v963
    %v970 = vpack.c.b16 %v966, %v965
    %v975 = vrot.slane %v29, 2
    %v978 = vsel %vm583, %v942, 0
    %980 = vmatprep.subr.bf16.mxu0 0
    %981 = vmatpush1.bf16.msra.mxu0 %v967
    %982 = vmatprep.subr.bf16.mxu0 0
    %983 = vmatpush1.bf16.msra.mxu0 %v968
    %984 = vmatprep.subr.bf16.mxu0 0
    %985 = vmatpush1.bf16.msra.mxu0 %v969
    %986 = vmatprep.subr.bf16.mxu0 0
    %987 = vmatpush1.bf16.msra.mxu0 %v970
    %988 = vmatprep.subr.bf16.mxu0 0
    %989 = vmatpush1.bf16.msra.mxu0 0
    %990 = vmatprep.subr.bf16.mxu0 0
    %991 = vmatpush1.bf16.msra.mxu0 0
    %992 = vmatprep.subr.bf16.mxu0 0
    %993 = vmatpush1.bf16.msra.mxu0 0
    %994 = vmatprep.subr.bf16.mxu0 0
    %995 = vmatpush1.bf16.msra.mxu0 0
    %996 = vmatprep.subr.bf16.mxu0 0
    %997 = vmatpush1.bf16.msra.mxu0 0
    %998 = vmatprep.subr.bf16.mxu0 0
    %999 = vmatpush1.bf16.msra.mxu0 0
    %1000 = vmatprep.subr.bf16.mxu0 0
    %1001 = vmatpush1.bf16.msra.mxu0 0
    %1002 = vmatprep.subr.bf16.mxu0 0
    %1003 = vmatpush1.bf16.msra.mxu0 0
    %1004 = vmatprep.subr.bf16.mxu0 0
    %1005 = vmatpush1.bf16.msra.mxu0 0
    %1006 = vmatprep.subr.bf16.mxu0 0
    %1007 = vmatpush1.bf16.msra.mxu0 0
    %1008 = vmatprep.subr.bf16.mxu0 0
    %1009 = vmatpush1.bf16.msra.mxu0 0
    %1010 = vmatprep.subr.bf16.mxu0 0
    %1011 = vmatpush1.bf16.msra.mxu0 0
    %1012 = vmatprep.mubr.bf16.mxu0 0
    %1013 = vmatmul.mubr.bf16.gmra.mrb[0].mxu0 %v978
    %v1014 = vpop.f32.mrb[0].mxu0
    %v1015 = vadd.f32 %v975, %v1014
    %v1016 = vpop.f32.mrb[0].mxu0
    %v1017 = vpop.f32.mrb[0].mxu0
    %v1018 = vpop.f32.mrb[0].mxu0
    %1019 = vdwg.mxu0
    %v1020 = vtanh.pop %v1015
    %v1021 = vpack.c.bf16 %v1020, %v1020
    %v1022 = vld [vmem:[#allocation2 + $0x110] sm:$0xf]
    %v1023 = vld [vmem:[#allocation2 + $0x114] sm:$0xf]
    %v1024 = vld [vmem:[#allocation2 + $0x118] sm:$0xf]
    %v1025 = vld [vmem:[#allocation2 + $0x11c] sm:$0xf]
    %v1026 = vld [vmem:[#allocation2 + $0x120] sm:$0xf]
    %v1027 = vld [vmem:[#allocation2 + $0x124] sm:$0xf]
    %v1028 = vld [vmem:[#allocation2 + $0x128] sm:$0xf]
    %v1029 = vld [vmem:[#allocation2 + $0x12c] sm:$0xf]
    %v1038 = vunpack.c.l.b16 %v1022
    %v1039 = vunpack.c.l.b16 %v1023
    %v1040 = vunpack.c.l.b16 %v1024
    %v1041 = vunpack.c.l.b16 %v1025
    %v1042 = vunpack.c.l.b16 %v1026
    %v1043 = vunpack.c.l.b16 %v1027
    %v1044 = vunpack.c.l.b16 %v1028
    %v1045 = vunpack.c.l.b16 %v1029
    %v1046 = vpack.c.b16 %v1039, %v1038
    %v1047 = vpack.c.b16 %v1041, %v1040
    %v1048 = vpack.c.b16 %v1043, %v1042
    %v1049 = vpack.c.b16 %v1045, %v1044
    %v1054 = vrot.slane %v29, 3
    %v1057 = vsel %vm583, %v1021, 0
    %1059 = vmatprep.subr.bf16.mxu0 0
    %1060 = vmatpush1.bf16.msra.mxu0 %v1046
    %1061 = vmatprep.subr.bf16.mxu0 0
    %1062 = vmatpush1.bf16.msra.mxu0 %v1047
    %1063 = vmatprep.subr.bf16.mxu0 0
    %1064 = vmatpush1.bf16.msra.mxu0 %v1048
    %1065 = vmatprep.subr.bf16.mxu0 0
    %1066 = vmatpush1.bf16.msra.mxu0 %v1049
    %1067 = vmatprep.subr.bf16.mxu0 0
    %1068 = vmatpush1.bf16.msra.mxu0 0
    %1069 = vmatprep.subr.bf16.mxu0 0
    %1070 = vmatpush1.bf16.msra.mxu0 0
    %1071 = vmatprep.subr.bf16.mxu0 0
    %1072 = vmatpush1.bf16.msra.mxu0 0
    %1073 = vmatprep.subr.bf16.mxu0 0
    %1074 = vmatpush1.bf16.msra.mxu0 0
    %1075 = vmatprep.subr.bf16.mxu0 0
    %1076 = vmatpush1.bf16.msra.mxu0 0
    %1077 = vmatprep.subr.bf16.mxu0 0
    %1078 = vmatpush1.bf16.msra.mxu0 0
    %1079 = vmatprep.subr.bf16.mxu0 0
    %1080 = vmatpush1.bf16.msra.mxu0 0
    %1081 = vmatprep.subr.bf16.mxu0 0
    %1082 = vmatpush1.bf16.msra.mxu0 0
    %1083 = vmatprep.subr.bf16.mxu0 0
    %1084 = vmatpush1.bf16.msra.mxu0 0
    %1085 = vmatprep.subr.bf16.mxu0 0
    %1086 = vmatpush1.bf16.msra.mxu0 0
    %1087 = vmatprep.subr.bf16.mxu0 0
    %1088 = vmatpush1.bf16.msra.mxu0 0
    %1089 = vmatprep.subr.bf16.mxu0 0
    %1090 = vmatpush1.bf16.msra.mxu0 0
    %1091 = vmatprep.mubr.bf16.mxu0 0
    %1092 = vmatmul.mubr.bf16.gmra.mrb[0].mxu0 %v1057
    %v1093 = vpop.f32.mrb[0].mxu0
    %v1094 = vadd.f32 %v1054, %v1093
    %v1095 = vpop.f32.mrb[0].mxu0
    %v1096 = vpop.f32.mrb[0].mxu0
    %v1097 = vpop.f32.mrb[0].mxu0
    %1098 = vdwg.mxu0
    %v1099 = vtanh.pop %v1094
    %v1100 = vpack.c.bf16 %v1099, %v1099
    %v1101 = vld [vmem:[#allocation2 + $0x130] sm:$0xf]
    %v1102 = vld [vmem:[#allocation2 + $0x134] sm:$0xf]
    %v1103 = vld [vmem:[#allocation2 + $0x138] sm:$0xf]
    %v1104 = vld [vmem:[#allocation2 + $0x13c] sm:$0xf]
    %v1105 = vld [vmem:[#allocation2 + $0x140] sm:$0xf]
    %v1106 = vld [vmem:[#allocation2 + $0x144] sm:$0xf]
    %v1107 = vld [vmem:[#allocation2 + $0x148] sm:$0xf]
    %v1108 = vld [vmem:[#allocation2 + $0x14c] sm:$0xf]
    %v1117 = vunpack.c.l.b16 %v1101
    %v1118 = vunpack.c.l.b16 %v1102
    %v1119 = vunpack.c.l.b16 %v1103
    %v1120 = vunpack.c.l.b16 %v1104
    %v1121 = vunpack.c.l.b16 %v1105
    %v1122 = vunpack.c.l.b16 %v1106
    %v1123 = vunpack.c.l.b16 %v1107
    %v1124 = vunpack.c.l.b16 %v1108
    %v1125 = vpack.c.b16 %v1118, %v1117
    %v1126 = vpack.c.b16 %v1120, %v1119
    %v1127 = vpack.c.b16 %v1122, %v1121
    %v1128 = vpack.c.b16 %v1124, %v1123
    %v1133 = vrot.slane %v29, 4
    %v1136 = vsel %vm583, %v1100, 0
    %1138 = vmatprep.subr.bf16.mxu0 0
    %1139 = vmatpush1.bf16.msra.mxu0 %v1125
    %1140 = vmatprep.subr.bf16.mxu0 0
    %1141 = vmatpush1.bf16.msra.mxu0 %v1126
    %1142 = vmatprep.subr.bf16.mxu0 0
    %1143 = vmatpush1.bf16.msra.mxu0 %v1127
    %1144 = vmatprep.subr.bf16.mxu0 0
    %1145 = vmatpush1.bf16.msra.mxu0 %v1128
    %1146 = vmatprep.subr.bf16.mxu0 0
    %1147 = vmatpush1.bf16.msra.mxu0 0
    %1148 = vmatprep.subr.bf16.mxu0 0
    %1149 = vmatpush1.bf16.msra.mxu0 0
    %1150 = vmatprep.subr.bf16.mxu0 0
    %1151 = vmatpush1.bf16.msra.mxu0 0
    %1152 = vmatprep.subr.bf16.mxu0 0
    %1153 = vmatpush1.bf16.msra.mxu0 0
    %1154 = vmatprep.subr.bf16.mxu0 0
    %1155 = vmatpush1.bf16.msra.mxu0 0
    %1156 = vmatprep.subr.bf16.mxu0 0
    %1157 = vmatpush1.bf16.msra.mxu0 0
    %1158 = vmatprep.subr.bf16.mxu0 0
    %1159 = vmatpush1.bf16.msra.mxu0 0
    %1160 = vmatprep.subr.bf16.mxu0 0
    %1161 = vmatpush1.bf16.msra.mxu0 0
    %1162 = vmatprep.subr.bf16.mxu0 0
    %1163 = vmatpush1.bf16.msra.mxu0 0
    %1164 = vmatprep.subr.bf16.mxu0 0
    %1165 = vmatpush1.bf16.msra.mxu0 0
    %1166 = vmatprep.subr.bf16.mxu0 0
    %1167 = vmatpush1.bf16.msra.mxu0 0
    %1168 = vmatprep.subr.bf16.mxu0 0
    %1169 = vmatpush1.bf16.msra.mxu0 0
    %1170 = vmatprep.mubr.bf16.mxu0 0
    %1171 = vmatmul.mubr.bf16.gmra.mrb[0].mxu0 %v1136
    %v1172 = vpop.f32.mrb[0].mxu0
    %v1173 = vadd.f32 %v1133, %v1172
    %v1174 = vpop.f32.mrb[0].mxu0
    %v1175 = vpop.f32.mrb[0].mxu0
    %v1176 = vpop.f32.mrb[0].mxu0
    %1177 = vdwg.mxu0
    %v1178 = vtanh.pop %v1173
    %v1179 = vpack.c.bf16 %v1178, %v1178
    %v1180 = vld [vmem:[#allocation2 + $0x150] sm:$0xf]
    %v1181 = vld [vmem:[#allocation2 + $0x154] sm:$0xf]
    %v1182 = vld [vmem:[#allocation2 + $0x158] sm:$0xf]
    %v1183 = vld [vmem:[#allocation2 + $0x15c] sm:$0xf]
    %v1184 = vld [vmem:[#allocation2 + $0x160] sm:$0xf]
    %v1185 = vld [vmem:[#allocation2 + $0x164] sm:$0xf]
    %v1186 = vld [vmem:[#allocation2 + $0x168] sm:$0xf]
    %v1187 = vld [vmem:[#allocation2 + $0x16c] sm:$0xf]
    %v1196 = vunpack.c.l.b16 %v1180
    %v1197 = vunpack.c.l.b16 %v1181
    %v1198 = vunpack.c.l.b16 %v1182
    %v1199 = vunpack.c.l.b16 %v1183
    %v1200 = vunpack.c.l.b16 %v1184
    %v1201 = vunpack.c.l.b16 %v1185
    %v1202 = vunpack.c.l.b16 %v1186
    %v1203 = vunpack.c.l.b16 %v1187
    %v1204 = vpack.c.b16 %v1197, %v1196
    %v1205 = vpack.c.b16 %v1199, %v1198
    %v1206 = vpack.c.b16 %v1201, %v1200
    %v1207 = vpack.c.b16 %v1203, %v1202
    %v1212 = vrot.slane %v29, 5
    %v1215 = vsel %vm583, %v1179, 0
    %1217 = vmatprep.subr.bf16.mxu0 0
    %1218 = vmatpush1.bf16.msra.mxu0 %v1204
    %1219 = vmatprep.subr.bf16.mxu0 0
    %1220 = vmatpush1.bf16.msra.mxu0 %v1205
    %1221 = vmatprep.subr.bf16.mxu0 0
    %1222 = vmatpush1.bf16.msra.mxu0 %v1206
    %1223 = vmatprep.subr.bf16.mxu0 0
    %1224 = vmatpush1.bf16.msra.mxu0 %v1207
    %1225 = vmatprep.subr.bf16.mxu0 0
    %1226 = vmatpush1.bf16.msra.mxu0 0
    %1227 = vmatprep.subr.bf16.mxu0 0
    %1228 = vmatpush1.bf16.msra.mxu0 0
    %1229 = vmatprep.subr.bf16.mxu0 0
    %1230 = vmatpush1.bf16.msra.mxu0 0
    %1231 = vmatprep.subr.bf16.mxu0 0
    %1232 = vmatpush1.bf16.msra.mxu0 0
    %1233 = vmatprep.subr.bf16.mxu0 0
    %1234 = vmatpush1.bf16.msra.mxu0 0
    %1235 = vmatprep.subr.bf16.mxu0 0
    %1236 = vmatpush1.bf16.msra.mxu0 0
    %1237 = vmatprep.subr.bf16.mxu0 0
    %1238 = vmatpush1.bf16.msra.mxu0 0
    %1239 = vmatprep.subr.bf16.mxu0 0
    %1240 = vmatpush1.bf16.msra.mxu0 0
    %1241 = vmatprep.subr.bf16.mxu0 0
    %1242 = vmatpush1.bf16.msra.mxu0 0
    %1243 = vmatprep.subr.bf16.mxu0 0
    %1244 = vmatpush1.bf16.msra.mxu0 0
    %1245 = vmatprep.subr.bf16.mxu0 0
    %1246 = vmatpush1.bf16.msra.mxu0 0
    %1247 = vmatprep.subr.bf16.mxu0 0
    %1248 = vmatpush1.bf16.msra.mxu0 0
    %1249 = vmatprep.mubr.bf16.mxu0 0
    %1250 = vmatmul.mubr.bf16.gmra.mrb[0].mxu0 %v1215
    %v1251 = vpop.f32.mrb[0].mxu0
    %v1252 = vadd.f32 %v1212, %v1251
    %v1253 = vpop.f32.mrb[0].mxu0
    %v1254 = vpop.f32.mrb[0].mxu0
    %v1255 = vpop.f32.mrb[0].mxu0
    %1256 = vdwg.mxu0
    %v1257 = vtanh.pop %v1252
    %v1258 = vpack.c.bf16 %v1257, %v1257
    %v1259 = vld [vmem:[#allocation2 + $0x170] sm:$0xf]
    %v1260 = vld [vmem:[#allocation2 + $0x174] sm:$0xf]
    %v1261 = vld [vmem:[#allocation2 + $0x178] sm:$0xf]
    %v1262 = vld [vmem:[#allocation2 + $0x17c] sm:$0xf]
    %v1263 = vld [vmem:[#allocation2 + $0x180] sm:$0xf]
    %v1264 = vld [vmem:[#allocation2 + $0x184] sm:$0xf]
    %v1265 = vld [vmem:[#allocation2 + $0x188] sm:$0xf]
    %v1266 = vld [vmem:[#allocation2 + $0x18c] sm:$0xf]
    %v1275 = vunpack.c.l.b16 %v1259
    %v1276 = vunpack.c.l.b16 %v1260
    %v1277 = vunpack.c.l.b16 %v1261
    %v1278 = vunpack.c.l.b16 %v1262
    %v1279 = vunpack.c.l.b16 %v1263
    %v1280 = vunpack.c.l.b16 %v1264
    %v1281 = vunpack.c.l.b16 %v1265
    %v1282 = vunpack.c.l.b16 %v1266
    %v1283 = vpack.c.b16 %v1276, %v1275
    %v1284 = vpack.c.b16 %v1278, %v1277
    %v1285 = vpack.c.b16 %v1280, %v1279
    %v1286 = vpack.c.b16 %v1282, %v1281
    %v1291 = vrot.slane %v29, 6
    %v1294 = vsel %vm583, %v1258, 0
    %1296 = vmatprep.subr.bf16.mxu0 0
    %1297 = vmatpush1.bf16.msra.mxu0 %v1283
    %1298 = vmatprep.subr.bf16.mxu0 0
    %1299 = vmatpush1.bf16.msra.mxu0 %v1284
    %1300 = vmatprep.subr.bf16.mxu0 0
    %1301 = vmatpush1.bf16.msra.mxu0 %v1285
    %1302 = vmatprep.subr.bf16.mxu0 0
    %1303 = vmatpush1.bf16.msra.mxu0 %v1286
    %1304 = vmatprep.subr.bf16.mxu0 0
    %1305 = vmatpush1.bf16.msra.mxu0 0
    %1306 = vmatprep.subr.bf16.mxu0 0
    %1307 = vmatpush1.bf16.msra.mxu0 0
    %1308 = vmatprep.subr.bf16.mxu0 0
    %1309 = vmatpush1.bf16.msra.mxu0 0
    %1310 = vmatprep.subr.bf16.mxu0 0
    %1311 = vmatpush1.bf16.msra.mxu0 0
    %1312 = vmatprep.subr.bf16.mxu0 0
    %1313 = vmatpush1.bf16.msra.mxu0 0
    %1314 = vmatprep.subr.bf16.mxu0 0
    %1315 = vmatpush1.bf16.msra.mxu0 0
    %1316 = vmatprep.subr.bf16.mxu0 0
    %1317 = vmatpush1.bf16.msra.mxu0 0
    %1318 = vmatprep.subr.bf16.mxu0 0
    %1319 = vmatpush1.bf16.msra.mxu0 0
    %1320 = vmatprep.subr.bf16.mxu0 0
    %1321 = vmatpush1.bf16.msra.mxu0 0
    %1322 = vmatprep.subr.bf16.mxu0 0
    %1323 = vmatpush1.bf16.msra.mxu0 0
    %1324 = vmatprep.subr.bf16.mxu0 0
    %1325 = vmatpush1.bf16.msra.mxu0 0
    %1326 = vmatprep.subr.bf16.mxu0 0
    %1327 = vmatpush1.bf16.msra.mxu0 0
    %1328 = vmatprep.mubr.bf16.mxu0 0
    %1329 = vmatmul.mubr.bf16.gmra.mrb[0].mxu0 %v1294
    %v1330 = vpop.f32.mrb[0].mxu0
    %v1331 = vadd.f32 %v1291, %v1330
    %v1332 = vpop.f32.mrb[0].mxu0
    %v1333 = vpop.f32.mrb[0].mxu0
    %v1334 = vpop.f32.mrb[0].mxu0
    %1335 = vdwg.mxu0
    %v1336 = vtanh.pop %v1331
    %v1337 = vpack.c.bf16 %v1336, %v1336
    %v1338 = vld [vmem:[#allocation2 + $0x190] sm:$0xf]
    %v1339 = vld [vmem:[#allocation2 + $0x194] sm:$0xf]
    %v1342 = vunpack.c.l.b16 %v1338
    %v1343 = vunpack.c.l.b16 %v1339
    %v1344 = vpack.c.b16 %v1343, %v1342
    %v1346 = vrot.slane %v29, 7
    %v1349 = vsel %vm106, %v1337, 0
    %1351 = vmatprep.subr.bf16.mxu0 0
    %1352 = vmatpush1.bf16.msra.mxu0 %v1344
    %1353 = vmatprep.subr.bf16.mxu0 0
    %1354 = vmatpush1.bf16.msra.mxu0 0
    %1355 = vmatprep.subr.bf16.mxu0 0
    %1356 = vmatpush1.bf16.msra.mxu0 0
    %1357 = vmatprep.subr.bf16.mxu0 0
    %1358 = vmatpush1.bf16.msra.mxu0 0
    %1359 = vmatprep.subr.bf16.mxu0 0
    %1360 = vmatpush1.bf16.msra.mxu0 0
    %1361 = vmatprep.subr.bf16.mxu0 0
    %1362 = vmatpush1.bf16.msra.mxu0 0
    %1363 = vmatprep.subr.bf16.mxu0 0
    %1364 = vmatpush1.bf16.msra.mxu0 0
    %1365 = vmatprep.subr.bf16.mxu0 0
    %1366 = vmatpush1.bf16.msra.mxu0 0
    %1367 = vmatprep.subr.bf16.mxu0 0
    %1368 = vmatpush1.bf16.msra.mxu0 0
    %1369 = vmatprep.subr.bf16.mxu0 0
    %1370 = vmatpush1.bf16.msra.mxu0 0
    %1371 = vmatprep.subr.bf16.mxu0 0
    %1372 = vmatpush1.bf16.msra.mxu0 0
    %1373 = vmatprep.subr.bf16.mxu0 0
    %1374 = vmatpush1.bf16.msra.mxu0 0
    %1375 = vmatprep.subr.bf16.mxu0 0
    %1376 = vmatpush1.bf16.msra.mxu0 0
    %1377 = vmatprep.subr.bf16.mxu0 0
    %1378 = vmatpush1.bf16.msra.mxu0 0
    %1379 = vmatprep.subr.bf16.mxu0 0
    %1380 = vmatpush1.bf16.msra.mxu0 0
    %1381 = vmatprep.subr.bf16.mxu0 0
    %1382 = vmatpush1.bf16.msra.mxu0 0
    %1383 = vmatprep.mubr.bf16.mxu0 0
    %1384 = vmatmul.mubr.bf16.gmra.mrb[0].mxu0 %v1349
    %v1385 = vpop.f32.mrb[0].mxu0
    %v1386 = vadd.f32 %v1346, %v1385
    %v1387 = vpop.f32.mrb[0].mxu0
    %v1388 = vpop.f32.mrb[0].mxu0
    %v1389 = vpop.f32.mrb[0].mxu0
    %1390 = vdwg.mxu0
    %1391 = vst [vmem:[%s2] sm:$0x1] %v1386
    // Predicated region
    $region14: #{point_clouds_cnn_forward.1} parent=1 // pred_check
      _
    $region15: #{point_clouds_cnn_forward.1} parent=1 // pred_check_branch
      %1393 = sbr.rel (0) target = $region17
    $region16: #{point_clouds_cnn_forward.1} parent=1 // pred_region
      _
    $region17: #{point_clouds_cnn_forward.1} parent=1 // pred_fallthru
      _
    // Predicated region
    $region18: #{point_clouds_cnn_forward.1} parent=1 // pred_check
      _
    $region19: #{point_clouds_cnn_forward.1} parent=1 // pred_check_branch
      %1395 = sbr.rel (0) target = $region21
    $region20: #{point_clouds_cnn_forward.1} parent=1 // pred_region
      _
    $region21: #{point_clouds_cnn_forward.1} parent=1 // pred_fallthru
      _
    %1396 = vsyncpa [#allocation3], 1

</llo_original>
